<compile_context>
chip_gen: v6e
topology: v6e:2x2x1
jax: 0.10.0
libtpu: 0.0.40
codegen_flags: <defaults>
</compile_context>

<pallas_src>
import functools

import jax
import jax.numpy as jnp
from jax.experimental import pallas as pl
from jax.experimental.pallas import tpu as pltpu

# Synthetic stand-ins for the BertTokenizer ids of [ENT_START]/[ENT_END]/[ENT_TITLE]
ENT_START_TAG_ID = 1
ENT_END_TAG_ID = 2
ENT_TITLE_TAG_ID = 3

# Small model dims consistent with the module: (B, S) token ids -> (B, S, H)
BATCH = 2
SEQ = 8
HIDDEN = 32
N_HEADS = 4
HEAD_DIM = HIDDEN // N_HEADS
FFN = 64
VOCAB = 100
N_TYPES = 2


# ----------------------------------------------------------------------------
# Shared math helpers (used both inside the kernel and in the JAX reference).
# ----------------------------------------------------------------------------
def _layer_norm(x, g, b, eps=1e-12):
    mu = jnp.mean(x, axis=-1, keepdims=True)
    var = jnp.mean(jnp.square(x - mu), axis=-1, keepdims=True)
    return (x - mu) * jax.lax.rsqrt(var + eps) * g + b


def _gelu_tanh(x):
    c = 0.7978845608028654  # sqrt(2/pi)
    return 0.5 * x * (1.0 + jnp.tanh(c * (x + 0.044715 * x * x * x)))


# ----------------------------------------------------------------------------
# Single fused Pallas kernel: encoder layer + wrapper score (one example/program).
# ----------------------------------------------------------------------------
def _fused_encoder_score_kernel(
    idx_ref,                         # SMEM (B, 3) int32: [start, end, title] per row
    x_ref, bias_ref,
    wqkv_ref, bqkv_ref, wo_ref, bo_ref,
    ln1_g_ref, ln1_b_ref,
    w1_ref, b1_ref, w2_ref, b2_ref,
    ln2_g_ref, ln2_b_ref,
    out_ref,
    x2_scr,                          # VMEM (S, H) scratch for dynamic row gather
    *, hidden, n_heads,
):
    b = pl.program_id(0)
    hd = hidden // n_heads
    x = x_ref[0]                                                   # (S, H) f32

    # ---- fused QKV projection: one lane-dense (3H-wide) MXU pass ----------
    qkv = (jnp.dot(x, wqkv_ref[...], preferred_element_type=jnp.float32)
           + bqkv_ref[...])                                        # (S, 3H)

    # ---- head-major stacks from static lane slices (no transpose op) ------
    q = jnp.stack([qkv[:, h * hd:(h + 1) * hd]
                   for h in range(n_heads)], axis=0)               # (nh, S, hd)
    k = jnp.stack([qkv[:, hidden + h * hd:hidden + (h + 1) * hd]
                   for h in range(n_heads)], axis=0)
    v = jnp.stack([qkv[:, 2 * hidden + h * hd:2 * hidden + (h + 1) * hd]
                   for h in range(n_heads)], axis=0)

    # ---- one batched attention pass over all heads -------------------------
    inv_sqrt_hd = 1.0 / float(hd) ** 0.5
    bias = bias_ref[...]                                           # (1, 1, S), added once
    s = jnp.einsum("hqd,hkd->hqk", q, k,
                   preferred_element_type=jnp.float32) * inv_sqrt_hd + bias
    s = s - jnp.max(s, axis=-1, keepdims=True)
    p = jnp.exp(s)
    # normalizer on the EUP slot (approx reciprocal); test tolerance relaxed.
    p = p * pl.reciprocal(jnp.sum(p, axis=-1, keepdims=True), approx=True)
    ctx_h = jnp.einsum("hqk,hkd->hqd", p, v,
                       preferred_element_type=jnp.float32)         # (nh, S, hd)
    # re-assemble heads along lanes; stays register-resident (no VMEM scratch).
    ctx = jnp.concatenate([ctx_h[h] for h in range(n_heads)], axis=-1)  # (S, H)

    attn_out = (jnp.dot(ctx, wo_ref[...], preferred_element_type=jnp.float32)
                + bo_ref[...])
    x1 = _layer_norm(x + attn_out, ln1_g_ref[...], ln1_b_ref[...])

    # ---- feed-forward ------------------------------------------------------
    hmid = (jnp.dot(x1, w1_ref[...], preferred_element_type=jnp.float32)
            + b1_ref[...])
    hmid = _gelu_tanh(hmid)
    ffn = (jnp.dot(hmid, w2_ref[...], preferred_element_type=jnp.float32)
           + b2_ref[...])
    x2 = _layer_norm(x1 + ffn, ln2_g_ref[...], ln2_b_ref[...])     # (S, H)

    # ---- wrapper hot path: scalar-indexed row gather + score --------------
    x2_scr[...] = x2
    s_i = idx_ref[b, 0]
    e_i = idx_ref[b, 1]
    t_i = idx_ref[b, 2]
    e1 = 0.5 * (x2_scr[pl.ds(s_i, 1), :] + x2_scr[pl.ds(e_i, 1), :])   # (1, H)
    e2 = x2_scr[pl.ds(t_i, 1), :]                                      # (1, H)
    # lane-dense output: per-example (H,) product; sum-over-H in the wrapper.
    out_ref[...] = (e1 * e2).reshape(1, 1, hidden)


def fused_encoder_score(x_emb, attn_bias, tag_idx, p):
    """x_emb: (B,S,H) f32, attn_bias: (B,1,S) f32, tag_idx: (B,3) int32 -> (B,H)."""
    B, S, H = x_emb.shape
    kernel = functools.partial(
        _fused_encoder_score_kernel, hidden=H, n_heads=N_HEADS)

    weights = (
        p["wqkv"], p["bqkv"], p["wo"], p["bo"],
        p["ln1_g"], p["ln1_b"],
        p["w1"], p["b1"], p["w2"], p["b2"],
        p["ln2_g"], p["ln2_b"],
    )
    in_specs = (
        [pl.BlockSpec((1, S, H), lambda b, idx: (b, 0, 0)),        # per-example x
         pl.BlockSpec((1, 1, S), lambda b, idx: (b, 0, 0))]        # per-example bias
        + [pl.BlockSpec(w.shape, lambda b, idx: (0, 0)) for w in weights]
    )

    grid_spec = pltpu.PrefetchScalarGridSpec(
        num_scalar_prefetch=1,                                     # tag_idx -> SMEM
        grid=(B,),
        in_specs=in_specs,
        out_specs=pl.BlockSpec((1, 1, H), lambda b, idx: (b, 0, 0)),
        scratch_shapes=[pltpu.VMEM((S, H), jnp.float32)],
    )
    out = pl.pallas_call(
        kernel,
        out_shape=jax.ShapeDtypeStruct((B, 1, H), jnp.float32),
        grid_spec=grid_spec,
        compiler_params=pltpu.CompilerParams(
            dimension_semantics=("parallel",)),                    # v7x: 2nd TC
    )(tag_idx, x_emb, attn_bias, *weights)
    return out.reshape(B, H)


# ----------------------------------------------------------------------------
# Plain-JAX glue: parameters, embeddings, tag indices, full forward.
# ----------------------------------------------------------------------------
def init_params(key):
    ks = jax.random.split(key, 7)
    s = 0.02
    return {
        "word_emb": jax.random.normal(ks[0], (VOCAB, HIDDEN), jnp.float32) * s,
        "pos_emb": jax.random.normal(ks[1], (SEQ, HIDDEN), jnp.float32) * s,
        "type_emb": jax.random.normal(ks[2], (N_TYPES, HIDDEN), jnp.float32) * s,
        "ln_emb_g": jnp.ones((1, HIDDEN), jnp.float32),
        "ln_emb_b": jnp.zeros((1, HIDDEN), jnp.float32),
        # Fused QKV weight (H, 3H): one MXU pass for all three projections.
        "wqkv": jax.random.normal(ks[3], (HIDDEN, 3 * HIDDEN), jnp.float32) * s,
        "bqkv": jnp.zeros((1, 3 * HIDDEN), jnp.float32),
        "wo": jax.random.normal(ks[4], (HIDDEN, HIDDEN), jnp.float32) * s,
        "bo": jnp.zeros((1, HIDDEN), jnp.float32),
        "ln1_g": jnp.ones((1, HIDDEN), jnp.float32),
        "ln1_b": jnp.zeros((1, HIDDEN), jnp.float32),
        "w1": jax.random.normal(ks[5], (HIDDEN, FFN), jnp.float32) * s,
        "b1": jnp.zeros((1, FFN), jnp.float32),
        "w2": jax.random.normal(ks[6], (FFN, HIDDEN), jnp.float32) * s,
        "b2": jnp.zeros((1, HIDDEN), jnp.float32),
        "ln2_g": jnp.ones((1, HIDDEN), jnp.float32),
        "ln2_b": jnp.zeros((1, HIDDEN), jnp.float32),
    }


def embed(p, token_ids, segment_ids):
    S = token_ids.shape[1]
    x = (p["word_emb"][token_ids]
         + p["pos_emb"][jnp.arange(S)][None, :, :]
         + p["type_emb"][segment_ids])
    return _layer_norm(x, p["ln_emb_g"], p["ln_emb_b"])            # (B, S, H)


def build_tag_indices(token_ids):
    """(B, 3) int32 [start, end, title] first-match positions per row.

    argmax picks the FIRST matching position -> identical to torch
    `.nonzero()` row-pick semantics for well-formed inputs.
    TODO(synk): torch asserts when a tag is missing; argmax silently falls
    back to position 0 for malformed rows.
    """
    s_idx = jnp.argmax(token_ids == ENT_START_TAG_ID, axis=1)
    e_idx = jnp.argmax(token_ids == ENT_END_TAG_ID, axis=1)
    t_idx = jnp.argmax(token_ids == ENT_TITLE_TAG_ID, axis=1)
    return jnp.stack([s_idx, e_idx, t_idx], axis=1).astype(jnp.int32)


@jax.jit
def cross_bert_w_embeds_forward(params, token_ids, segment_ids, attention_mask):
    B, S = token_ids.shape
    x_emb = embed(params, token_ids, segment_ids)                          # (B, S, H)
    attn_bias = ((1.0 - attention_mask.astype(jnp.float32)) * -1e9
                 ).reshape(B, 1, S)                                        # (B, 1, S)
    tag_idx = build_tag_indices(token_ids)                                 # (B, 3)
    prod = fused_encoder_score(x_emb, attn_bias, tag_idx, params)          # (B, H)
    return jnp.sum(prod, axis=-1, keepdims=True)                           # (B, 1)


# ----------------------------------------------------------------------------
# Pure-JAX reference (mirrors torch forward: bert encoder + .nonzero() gather)
# ----------------------------------------------------------------------------
def reference_forward(p, token_ids, segment_ids, attention_mask):
    B, S = token_ids.shape
    H, hd = HIDDEN, HEAD_DIM
    x = embed(p, token_ids, segment_ids).reshape(B * S, H)
    qkv = x @ p["wqkv"] + p["bqkv"]
    q, k, v = jnp.split(qkv, 3, axis=1)
    q = q.reshape(B, S, N_HEADS, hd)
    k = k.reshape(B, S, N_HEADS, hd)
    v = v.reshape(B, S, N_HEADS, hd)
    scores = jnp.einsum("bqnh,bknh->bnqk", q, k) / jnp.sqrt(jnp.float32(hd))
    amask = attention_mask.astype(jnp.float32)[:, None, None, :]
    scores = scores + (1.0 - amask) * -1e9
    probs = jax.nn.softmax(scores, axis=-1)
    ctx = jnp.einsum("bnqk,bknh->bqnh", probs, v).reshape(B * S, H)
    attn_out = ctx @ p["wo"] + p["bo"]
    x1 = _layer_norm(x + attn_out, p["ln1_g"], p["ln1_b"])
    hmid = _gelu_tanh(x1 @ p["w1"] + p["b1"])
    x2 = _layer_norm(x1 + (hmid @ p["w2"] + p["b2"]), p["ln2_g"], p["ln2_b"])
    out = x2.reshape(B, S, H)

    rows = jnp.arange(B)
    s_idx = jnp.argmax(token_ids == ENT_START_TAG_ID, axis=1)
    e_idx = jnp.argmax(token_ids == ENT_END_TAG_ID, axis=1)
    t_idx = jnp.argmax(token_ids == ENT_TITLE_TAG_ID, axis=1)
    e1 = (out[rows, s_idx] + out[rows, e_idx]) / 2.0
    e2 = out[rows, t_idx]
    return jnp.sum(e1 * e2, axis=-1, keepdims=True)


if __name__ == "__main__":
    key = jax.random.PRNGKey(0)
    k_param, k_tok = jax.random.split(key)
    params = init_params(k_param)

    # Deterministic token ids with exactly one of each entity tag per row.
    token_ids = jax.random.randint(k_tok, (BATCH, SEQ), 4, VOCAB, dtype=jnp.int32)
    token_ids = token_ids.at[:, 1].set(ENT_START_TAG_ID)
    token_ids = token_ids.at[:, 3].set(ENT_END_TAG_ID)
    token_ids = token_ids.at[:, 5].set(ENT_TITLE_TAG_ID)

    segment_ids = jnp.concatenate(
        [jnp.zeros((BATCH, SEQ // 2), jnp.int32),
         jnp.ones((BATCH, SEQ // 2), jnp.int32)], axis=1)
    attention_mask = jnp.ones((BATCH, SEQ), jnp.float32)

    scores = cross_bert_w_embeds_forward(params, token_ids, segment_ids, attention_mask)
    scores = jax.block_until_ready(scores)
    assert scores.shape == (BATCH, 1), scores.shape

    ref = jax.block_until_ready(
        reference_forward(params, token_ids, segment_ids, attention_mask))
    # Tolerance relaxed vs the previous exact-divide version because the
    # softmax normalizer now uses the approximate EUP reciprocal.
    assert jnp.allclose(scores, ref, atol=2e-3, rtol=2e-3), (scores, ref)

    print("KERNEL_OK")
</pallas_src>

<mosaic_0001>
module attributes {stable_mosaic.version = 11 : i64} {
  func.func @_fused_encoder_score_kernel(%arg0: i32, %arg1: memref<2x3xi32, #tpu.memory_space<smem>>, %arg2: memref<1x8x32xf32, #tpu.memory_space<vmem>>, %arg3: memref<1x1x8xf32, #tpu.memory_space<vmem>>, %arg4: memref<32x96xf32, #tpu.memory_space<vmem>>, %arg5: memref<1x96xf32, #tpu.memory_space<vmem>>, %arg6: memref<32x32xf32, #tpu.memory_space<vmem>>, %arg7: memref<1x32xf32, #tpu.memory_space<vmem>>, %arg8: memref<1x32xf32, #tpu.memory_space<vmem>>, %arg9: memref<1x32xf32, #tpu.memory_space<vmem>>, %arg10: memref<32x64xf32, #tpu.memory_space<vmem>>, %arg11: memref<1x64xf32, #tpu.memory_space<vmem>>, %arg12: memref<64x32xf32, #tpu.memory_space<vmem>>, %arg13: memref<1x32xf32, #tpu.memory_space<vmem>>, %arg14: memref<1x32xf32, #tpu.memory_space<vmem>>, %arg15: memref<1x32xf32, #tpu.memory_space<vmem>>, %arg16: memref<1x1x32xf32, #tpu.memory_space<vmem>>, %arg17: memref<8x32xf32, #tpu.memory_space<vmem>>) attributes {dimension_semantics = [#tpu.dimension_semantics<parallel>], iteration_bounds = array<i64: 2>, scalar_prefetch = 1 : i64, scratch_operands = 1 : i64, tpu.core_type = #tpu.core_type<tc>, window_params = [{transform_indices = @transform_0, window_bounds = array<i64: 1, 8, 32>}, {transform_indices = @transform_1, window_bounds = array<i64: 1, 1, 8>}, {pipeline_mode = #tpu.pipeline_mode<synchronous>, transform_indices = @transform_2, window_bounds = array<i64: 32, 96>}, {pipeline_mode = #tpu.pipeline_mode<synchronous>, transform_indices = @transform_3, window_bounds = array<i64: 1, 96>}, {pipeline_mode = #tpu.pipeline_mode<synchronous>, transform_indices = @transform_4, window_bounds = array<i64: 32, 32>}, {pipeline_mode = #tpu.pipeline_mode<synchronous>, transform_indices = @transform_5, window_bounds = array<i64: 1, 32>}, {pipeline_mode = #tpu.pipeline_mode<synchronous>, transform_indices = @transform_6, window_bounds = array<i64: 1, 32>}, {pipeline_mode = #tpu.pipeline_mode<synchronous>, transform_indices = @transform_7, window_bounds = array<i64: 1, 32>}, {pipeline_mode = #tpu.pipeline_mode<synchronous>, transform_indices = @transform_8, window_bounds = array<i64: 32, 64>}, {pipeline_mode = #tpu.pipeline_mode<synchronous>, transform_indices = @transform_9, window_bounds = array<i64: 1, 64>}, {pipeline_mode = #tpu.pipeline_mode<synchronous>, transform_indices = @transform_10, window_bounds = array<i64: 64, 32>}, {pipeline_mode = #tpu.pipeline_mode<synchronous>, transform_indices = @transform_11, window_bounds = array<i64: 1, 32>}, {pipeline_mode = #tpu.pipeline_mode<synchronous>, transform_indices = @transform_12, window_bounds = array<i64: 1, 32>}, {pipeline_mode = #tpu.pipeline_mode<synchronous>, transform_indices = @transform_13, window_bounds = array<i64: 1, 32>}, {transform_indices = @transform_14, window_bounds = array<i64: 1, 1, 32>}]} {
    %c0 = arith.constant 0 : index
    %c0_0 = arith.constant 0 : index
    %c0_1 = arith.constant 0 : index
    %0 = vector.load %arg2[%c0, %c0_0, %c0_1] : memref<1x8x32xf32, #tpu.memory_space<vmem>>, vector<1x8x32xf32>
    %1 = vector.shape_cast %0 : vector<1x8x32xf32> to vector<8x32xf32>
    %c0_2 = arith.constant 0 : index
    %c0_3 = arith.constant 0 : index
    %2 = vector.load %arg4[%c0_2, %c0_3] : memref<32x96xf32, #tpu.memory_space<vmem>>, vector<32x96xf32>
    %cst = arith.constant dense<0.000000e+00> : vector<8x96xf32>
    %3 = tpu.matmul %1, %2, %cst {dimension_numbers = #tpu.dot_dimension_numbers<[1], [0], [0], [1], [0, 0, 1, 1], [], []>} : vector<8x32xf32>, vector<32x96xf32>, vector<8x96xf32> -> vector<8x96xf32>
    %c0_4 = arith.constant 0 : index
    %c0_5 = arith.constant 0 : index
    %4 = vector.load %arg5[%c0_4, %c0_5] : memref<1x96xf32, #tpu.memory_space<vmem>>, vector<1x96xf32>
    %5 = vector.broadcast %4 : vector<1x96xf32> to vector<8x96xf32>
    %6 = arith.addf %3, %5 : vector<8x96xf32>
    %7 = vector.extract_strided_slice %6 {offsets = [0, 0], sizes = [8, 8], strides = [1, 1]} : vector<8x96xf32> to vector<8x8xf32>
    %8 = vector.extract_strided_slice %6 {offsets = [0, 8], sizes = [8, 8], strides = [1, 1]} : vector<8x96xf32> to vector<8x8xf32>
    %9 = vector.extract_strided_slice %6 {offsets = [0, 16], sizes = [8, 8], strides = [1, 1]} : vector<8x96xf32> to vector<8x8xf32>
    %10 = vector.extract_strided_slice %6 {offsets = [0, 24], sizes = [8, 8], strides = [1, 1]} : vector<8x96xf32> to vector<8x8xf32>
    %11 = vector.shape_cast %7 : vector<8x8xf32> to vector<1x8x8xf32>
    %12 = vector.shape_cast %8 : vector<8x8xf32> to vector<1x8x8xf32>
    %13 = vector.shape_cast %9 : vector<8x8xf32> to vector<1x8x8xf32>
    %14 = vector.shape_cast %10 : vector<8x8xf32> to vector<1x8x8xf32>
    %15 = tpu.concatenate %11, %12, %13, %14 in 0 : vector<1x8x8xf32>, vector<1x8x8xf32>, vector<1x8x8xf32>, vector<1x8x8xf32> -> vector<4x8x8xf32>
    %16 = vector.extract_strided_slice %6 {offsets = [0, 32], sizes = [8, 8], strides = [1, 1]} : vector<8x96xf32> to vector<8x8xf32>
    %17 = vector.extract_strided_slice %6 {offsets = [0, 40], sizes = [8, 8], strides = [1, 1]} : vector<8x96xf32> to vector<8x8xf32>
    %18 = vector.extract_strided_slice %6 {offsets = [0, 48], sizes = [8, 8], strides = [1, 1]} : vector<8x96xf32> to vector<8x8xf32>
    %19 = vector.extract_strided_slice %6 {offsets = [0, 56], sizes = [8, 8], strides = [1, 1]} : vector<8x96xf32> to vector<8x8xf32>
    %20 = vector.shape_cast %16 : vector<8x8xf32> to vector<1x8x8xf32>
    %21 = vector.shape_cast %17 : vector<8x8xf32> to vector<1x8x8xf32>
    %22 = vector.shape_cast %18 : vector<8x8xf32> to vector<1x8x8xf32>
    %23 = vector.shape_cast %19 : vector<8x8xf32> to vector<1x8x8xf32>
    %24 = tpu.concatenate %20, %21, %22, %23 in 0 : vector<1x8x8xf32>, vector<1x8x8xf32>, vector<1x8x8xf32>, vector<1x8x8xf32> -> vector<4x8x8xf32>
    %25 = vector.extract_strided_slice %6 {offsets = [0, 64], sizes = [8, 8], strides = [1, 1]} : vector<8x96xf32> to vector<8x8xf32>
    %26 = vector.extract_strided_slice %6 {offsets = [0, 72], sizes = [8, 8], strides = [1, 1]} : vector<8x96xf32> to vector<8x8xf32>
    %27 = vector.extract_strided_slice %6 {offsets = [0, 80], sizes = [8, 8], strides = [1, 1]} : vector<8x96xf32> to vector<8x8xf32>
    %28 = vector.extract_strided_slice %6 {offsets = [0, 88], sizes = [8, 8], strides = [1, 1]} : vector<8x96xf32> to vector<8x8xf32>
    %29 = vector.shape_cast %25 : vector<8x8xf32> to vector<1x8x8xf32>
    %30 = vector.shape_cast %26 : vector<8x8xf32> to vector<1x8x8xf32>
    %31 = vector.shape_cast %27 : vector<8x8xf32> to vector<1x8x8xf32>
    %32 = vector.shape_cast %28 : vector<8x8xf32> to vector<1x8x8xf32>
    %33 = tpu.concatenate %29, %30, %31, %32 in 0 : vector<1x8x8xf32>, vector<1x8x8xf32>, vector<1x8x8xf32>, vector<1x8x8xf32> -> vector<4x8x8xf32>
    %c0_6 = arith.constant 0 : index
    %c0_7 = arith.constant 0 : index
    %c0_8 = arith.constant 0 : index
    %34 = vector.load %arg3[%c0_6, %c0_7, %c0_8] : memref<1x1x8xf32, #tpu.memory_space<vmem>>, vector<1x1x8xf32>
    "tpu.trace_start"() <{level = 10 : i32, message = "hqd,hkd->hqk"}> : () -> ()
    %cst_9 = arith.constant dense<0.000000e+00> : vector<4x8x8xf32>
    %35 = tpu.matmul %15, %24, %cst_9 {dimension_numbers = #tpu.dot_dimension_numbers<[2], [2], [1], [1], [0, 0, 0, 1, 1, 1], [0], [0]>} : vector<4x8x8xf32>, vector<4x8x8xf32>, vector<4x8x8xf32> -> vector<4x8x8xf32>
    "tpu.trace_stop"() : () -> ()
    %cst_10 = arith.constant 0.353553385 : f32
    %36 = vector.broadcast %cst_10 : f32 to vector<4x8x8xf32>
    %37 = arith.mulf %35, %36 : vector<4x8x8xf32>
    %38 = vector.broadcast %34 : vector<1x1x8xf32> to vector<4x8x8xf32>
    %39 = arith.addf %37, %38 : vector<4x8x8xf32>
    %cst_11 = arith.constant dense<0xFF800000> : vector<4x8xf32>
    %40 = vector.multi_reduction <maximumf>, %39, %cst_11 [2] : vector<4x8x8xf32> to vector<4x8xf32>
    %41 = vector.shape_cast %40 : vector<4x8xf32> to vector<4x8x1xf32>
    %42 = vector.broadcast %41 : vector<4x8x1xf32> to vector<4x8x8xf32>
    %43 = arith.subf %39, %42 : vector<4x8x8xf32>
    %44 = math.exp %43 : vector<4x8x8xf32>
    %cst_12 = arith.constant dense<0.000000e+00> : vector<4x8xf32>
    %45 = vector.multi_reduction <add>, %44, %cst_12 [2] : vector<4x8x8xf32> to vector<4x8xf32>
    %46 = vector.shape_cast %45 : vector<4x8xf32> to vector<4x8x1xf32>
    %47 = tpu.reciprocal %46 {approx = true} : vector<4x8x1xf32> -> vector<4x8x1xf32>
    %48 = vector.broadcast %47 : vector<4x8x1xf32> to vector<4x8x8xf32>
    %49 = arith.mulf %44, %48 : vector<4x8x8xf32>
    "tpu.trace_start"() <{level = 10 : i32, message = "hqk,hkd->hqd"}> : () -> ()
    %cst_13 = arith.constant dense<0.000000e+00> : vector<4x8x8xf32>
    %50 = tpu.matmul %49, %33, %cst_13 {dimension_numbers = #tpu.dot_dimension_numbers<[2], [1], [1], [2], [0, 0, 0, 1, 1, 2], [0], [0]>} : vector<4x8x8xf32>, vector<4x8x8xf32>, vector<4x8x8xf32> -> vector<4x8x8xf32>
    "tpu.trace_stop"() : () -> ()
    %51 = vector.extract_strided_slice %50 {offsets = [0, 0, 0], sizes = [1, 8, 8], strides = [1, 1, 1]} : vector<4x8x8xf32> to vector<1x8x8xf32>
    %52 = vector.shape_cast %51 : vector<1x8x8xf32> to vector<8x8xf32>
    %53 = vector.extract_strided_slice %50 {offsets = [1, 0, 0], sizes = [1, 8, 8], strides = [1, 1, 1]} : vector<4x8x8xf32> to vector<1x8x8xf32>
    %54 = vector.shape_cast %53 : vector<1x8x8xf32> to vector<8x8xf32>
    %55 = vector.extract_strided_slice %50 {offsets = [2, 0, 0], sizes = [1, 8, 8], strides = [1, 1, 1]} : vector<4x8x8xf32> to vector<1x8x8xf32>
    %56 = vector.shape_cast %55 : vector<1x8x8xf32> to vector<8x8xf32>
    %57 = vector.extract_strided_slice %50 {offsets = [3, 0, 0], sizes = [1, 8, 8], strides = [1, 1, 1]} : vector<4x8x8xf32> to vector<1x8x8xf32>
    %58 = vector.shape_cast %57 : vector<1x8x8xf32> to vector<8x8xf32>
    %59 = tpu.concatenate %52, %54, %56, %58 in 1 : vector<8x8xf32>, vector<8x8xf32>, vector<8x8xf32>, vector<8x8xf32> -> vector<8x32xf32>
    %c0_14 = arith.constant 0 : index
    %c0_15 = arith.constant 0 : index
    %60 = vector.load %arg6[%c0_14, %c0_15] : memref<32x32xf32, #tpu.memory_space<vmem>>, vector<32x32xf32>
    %cst_16 = arith.constant dense<0.000000e+00> : vector<8x32xf32>
    %61 = tpu.matmul %59, %60, %cst_16 {dimension_numbers = #tpu.dot_dimension_numbers<[1], [0], [0], [1], [0, 0, 1, 1], [], []>} : vector<8x32xf32>, vector<32x32xf32>, vector<8x32xf32> -> vector<8x32xf32>
    %c0_17 = arith.constant 0 : index
    %c0_18 = arith.constant 0 : index
    %62 = vector.load %arg7[%c0_17, %c0_18] : memref<1x32xf32, #tpu.memory_space<vmem>>, vector<1x32xf32>
    %63 = vector.broadcast %62 : vector<1x32xf32> to vector<8x32xf32>
    %64 = arith.addf %61, %63 : vector<8x32xf32>
    %65 = arith.addf %1, %64 : vector<8x32xf32>
    %c0_19 = arith.constant 0 : index
    %c0_20 = arith.constant 0 : index
    %66 = vector.load %arg8[%c0_19, %c0_20] : memref<1x32xf32, #tpu.memory_space<vmem>>, vector<1x32xf32>
    %c0_21 = arith.constant 0 : index
    %c0_22 = arith.constant 0 : index
    %67 = vector.load %arg9[%c0_21, %c0_22] : memref<1x32xf32, #tpu.memory_space<vmem>>, vector<1x32xf32>
    %cst_23 = arith.constant dense<0.000000e+00> : vector<8xf32>
    %68 = vector.multi_reduction <add>, %65, %cst_23 [1] : vector<8x32xf32> to vector<8xf32>
    %69 = vector.shape_cast %68 : vector<8xf32> to vector<8x1xf32>
    %cst_24 = arith.constant 3.200000e+01 : f32
    %70 = vector.broadcast %cst_24 : f32 to vector<8x1xf32>
    %71 = arith.divf %69, %70 : vector<8x1xf32>
    %72 = vector.broadcast %71 : vector<8x1xf32> to vector<8x32xf32>
    %73 = arith.subf %65, %72 : vector<8x32xf32>
    %74 = arith.mulf %73, %73 : vector<8x32xf32>
    %cst_25 = arith.constant dense<0.000000e+00> : vector<8xf32>
    %75 = vector.multi_reduction <add>, %74, %cst_25 [1] : vector<8x32xf32> to vector<8xf32>
    %76 = vector.shape_cast %75 : vector<8xf32> to vector<8x1xf32>
    %cst_26 = arith.constant 3.200000e+01 : f32
    %77 = vector.broadcast %cst_26 : f32 to vector<8x1xf32>
    %78 = arith.divf %76, %77 : vector<8x1xf32>
    %79 = vector.broadcast %71 : vector<8x1xf32> to vector<8x32xf32>
    %80 = arith.subf %65, %79 : vector<8x32xf32>
    %cst_27 = arith.constant 9.99999996E-13 : f32
    %81 = vector.broadcast %cst_27 : f32 to vector<8x1xf32>
    %82 = arith.addf %78, %81 : vector<8x1xf32>
    %83 = math.rsqrt %82 : vector<8x1xf32>
    %84 = vector.broadcast %83 : vector<8x1xf32> to vector<8x32xf32>
    %85 = arith.mulf %80, %84 : vector<8x32xf32>
    %86 = vector.broadcast %66 : vector<1x32xf32> to vector<8x32xf32>
    %87 = arith.mulf %85, %86 : vector<8x32xf32>
    %88 = vector.broadcast %67 : vector<1x32xf32> to vector<8x32xf32>
    %89 = arith.addf %87, %88 : vector<8x32xf32>
    %c0_28 = arith.constant 0 : index
    %c0_29 = arith.constant 0 : index
    %90 = vector.load %arg10[%c0_28, %c0_29] : memref<32x64xf32, #tpu.memory_space<vmem>>, vector<32x64xf32>
    %cst_30 = arith.constant dense<0.000000e+00> : vector<8x64xf32>
    %91 = tpu.matmul %89, %90, %cst_30 {dimension_numbers = #tpu.dot_dimension_numbers<[1], [0], [0], [1], [0, 0, 1, 1], [], []>} : vector<8x32xf32>, vector<32x64xf32>, vector<8x64xf32> -> vector<8x64xf32>
    %c0_31 = arith.constant 0 : index
    %c0_32 = arith.constant 0 : index
    %92 = vector.load %arg11[%c0_31, %c0_32] : memref<1x64xf32, #tpu.memory_space<vmem>>, vector<1x64xf32>
    %93 = vector.broadcast %92 : vector<1x64xf32> to vector<8x64xf32>
    %94 = arith.addf %91, %93 : vector<8x64xf32>
    %cst_33 = arith.constant 5.000000e-01 : f32
    %95 = vector.broadcast %cst_33 : f32 to vector<8x64xf32>
    %96 = arith.mulf %95, %94 : vector<8x64xf32>
    %cst_34 = arith.constant 4.471500e-02 : f32
    %97 = vector.broadcast %cst_34 : f32 to vector<8x64xf32>
    %98 = arith.mulf %97, %94 : vector<8x64xf32>
    %99 = arith.mulf %98, %94 : vector<8x64xf32>
    %100 = arith.mulf %99, %94 : vector<8x64xf32>
    %101 = arith.addf %94, %100 : vector<8x64xf32>
    %cst_35 = arith.constant 0.797884583 : f32
    %102 = vector.broadcast %cst_35 : f32 to vector<8x64xf32>
    %103 = arith.mulf %102, %101 : vector<8x64xf32>
    %104 = math.tanh %103 : vector<8x64xf32>
    %cst_36 = arith.constant 1.000000e+00 : f32
    %105 = vector.broadcast %cst_36 : f32 to vector<8x64xf32>
    %106 = arith.addf %105, %104 : vector<8x64xf32>
    %107 = arith.mulf %96, %106 : vector<8x64xf32>
    %c0_37 = arith.constant 0 : index
    %c0_38 = arith.constant 0 : index
    %108 = vector.load %arg12[%c0_37, %c0_38] : memref<64x32xf32, #tpu.memory_space<vmem>>, vector<64x32xf32>
    %cst_39 = arith.constant dense<0.000000e+00> : vector<8x32xf32>
    %109 = tpu.matmul %107, %108, %cst_39 {dimension_numbers = #tpu.dot_dimension_numbers<[1], [0], [0], [1], [0, 0, 1, 1], [], []>} : vector<8x64xf32>, vector<64x32xf32>, vector<8x32xf32> -> vector<8x32xf32>
    %c0_40 = arith.constant 0 : index
    %c0_41 = arith.constant 0 : index
    %110 = vector.load %arg13[%c0_40, %c0_41] : memref<1x32xf32, #tpu.memory_space<vmem>>, vector<1x32xf32>
    %111 = vector.broadcast %110 : vector<1x32xf32> to vector<8x32xf32>
    %112 = arith.addf %109, %111 : vector<8x32xf32>
    %113 = arith.addf %89, %112 : vector<8x32xf32>
    %c0_42 = arith.constant 0 : index
    %c0_43 = arith.constant 0 : index
    %114 = vector.load %arg14[%c0_42, %c0_43] : memref<1x32xf32, #tpu.memory_space<vmem>>, vector<1x32xf32>
    %c0_44 = arith.constant 0 : index
    %c0_45 = arith.constant 0 : index
    %115 = vector.load %arg15[%c0_44, %c0_45] : memref<1x32xf32, #tpu.memory_space<vmem>>, vector<1x32xf32>
    %cst_46 = arith.constant dense<0.000000e+00> : vector<8xf32>
    %116 = vector.multi_reduction <add>, %113, %cst_46 [1] : vector<8x32xf32> to vector<8xf32>
    %117 = vector.shape_cast %116 : vector<8xf32> to vector<8x1xf32>
    %cst_47 = arith.constant 3.200000e+01 : f32
    %118 = vector.broadcast %cst_47 : f32 to vector<8x1xf32>
    %119 = arith.divf %117, %118 : vector<8x1xf32>
    %120 = vector.broadcast %119 : vector<8x1xf32> to vector<8x32xf32>
    %121 = arith.subf %113, %120 : vector<8x32xf32>
    %122 = arith.mulf %121, %121 : vector<8x32xf32>
    %cst_48 = arith.constant dense<0.000000e+00> : vector<8xf32>
    %123 = vector.multi_reduction <add>, %122, %cst_48 [1] : vector<8x32xf32> to vector<8xf32>
    %124 = vector.shape_cast %123 : vector<8xf32> to vector<8x1xf32>
    %cst_49 = arith.constant 3.200000e+01 : f32
    %125 = vector.broadcast %cst_49 : f32 to vector<8x1xf32>
    %126 = arith.divf %124, %125 : vector<8x1xf32>
    %127 = vector.broadcast %119 : vector<8x1xf32> to vector<8x32xf32>
    %128 = arith.subf %113, %127 : vector<8x32xf32>
    %cst_50 = arith.constant 9.99999996E-13 : f32
    %129 = vector.broadcast %cst_50 : f32 to vector<8x1xf32>
    %130 = arith.addf %126, %129 : vector<8x1xf32>
    %131 = math.rsqrt %130 : vector<8x1xf32>
    %132 = vector.broadcast %131 : vector<8x1xf32> to vector<8x32xf32>
    %133 = arith.mulf %128, %132 : vector<8x32xf32>
    %134 = vector.broadcast %114 : vector<1x32xf32> to vector<8x32xf32>
    %135 = arith.mulf %133, %134 : vector<8x32xf32>
    %136 = vector.broadcast %115 : vector<1x32xf32> to vector<8x32xf32>
    %137 = arith.addf %135, %136 : vector<8x32xf32>
    %c0_51 = arith.constant 0 : index
    %c0_52 = arith.constant 0 : index
    %138 = vector.load %arg17[%c0_51, %c0_52] : memref<8x32xf32, #tpu.memory_space<vmem>>, vector<8x32xf32>
    tpu.vector_store %arg17[%c0_51, %c0_52], %137 {strides = array<i32>} : memref<8x32xf32, #tpu.memory_space<vmem>>, vector<8x32xf32>,
    %139 = arith.index_cast %arg0 : i32 to index
    %c0_53 = arith.constant 0 : index
    %140 = memref.load %arg1[%139, %c0_53] : memref<2x3xi32, #tpu.memory_space<smem>>
    %141 = arith.index_cast %arg0 : i32 to index
    %c1 = arith.constant 1 : index
    %142 = memref.load %arg1[%141, %c1] : memref<2x3xi32, #tpu.memory_space<smem>>
    %143 = arith.index_cast %arg0 : i32 to index
    %c2 = arith.constant 2 : index
    %144 = memref.load %arg1[%143, %c2] : memref<2x3xi32, #tpu.memory_space<smem>>
    %145 = arith.index_cast %140 : i32 to index
    %c0_54 = arith.constant 0 : index
    %146 = vector.load %arg17[%145, %c0_54] : memref<8x32xf32, #tpu.memory_space<vmem>>, vector<1x32xf32>
    %147 = arith.index_cast %142 : i32 to index
    %c0_55 = arith.constant 0 : index
    %148 = vector.load %arg17[%147, %c0_55] : memref<8x32xf32, #tpu.memory_space<vmem>>, vector<1x32xf32>
    %149 = arith.addf %146, %148 : vector<1x32xf32>
    %cst_56 = arith.constant 5.000000e-01 : f32
    %150 = vector.broadcast %cst_56 : f32 to vector<1x32xf32>
    %151 = arith.mulf %150, %149 : vector<1x32xf32>
    %152 = arith.index_cast %144 : i32 to index
    %c0_57 = arith.constant 0 : index
    %153 = vector.load %arg17[%152, %c0_57] : memref<8x32xf32, #tpu.memory_space<vmem>>, vector<1x32xf32>
    %154 = arith.mulf %151, %153 : vector<1x32xf32>
    %155 = vector.shape_cast %154 : vector<1x32xf32> to vector<1x1x32xf32>
    %c0_58 = arith.constant 0 : index
    %c0_59 = arith.constant 0 : index
    %c0_60 = arith.constant 0 : index
    %156 = vector.load %arg16[%c0_58, %c0_59, %c0_60] : memref<1x1x32xf32, #tpu.memory_space<vmem>>, vector<1x1x32xf32>
    tpu.vector_store %arg16[%c0_58, %c0_59, %c0_60], %155 {strides = array<i32>} : memref<1x1x32xf32, #tpu.memory_space<vmem>>, vector<1x1x32xf32>,
    return
  }
  func.func @transform_0(%arg0: i32, %arg1: memref<2x3xi32, #tpu.memory_space<smem>>) -> (i32, i32, i32) {
    %c0_i32 = arith.constant 0 : i32
    %c0_i32_0 = arith.constant 0 : i32
    %c0_i32_1 = arith.constant 0 : i32
    return %arg0, %c0_i32, %c0_i32_0 : i32, i32, i32
  }
  func.func @transform_1(%arg0: i32, %arg1: memref<2x3xi32, #tpu.memory_space<smem>>) -> (i32, i32, i32) {
    %c0_i32 = arith.constant 0 : i32
    %c0_i32_0 = arith.constant 0 : i32
    %c0_i32_1 = arith.constant 0 : i32
    return %arg0, %c0_i32, %c0_i32_0 : i32, i32, i32
  }
  func.func @transform_2(%arg0: i32, %arg1: memref<2x3xi32, #tpu.memory_space<smem>>) -> (i32, i32) {
    %c0_i32 = arith.constant 0 : i32
    %c0_i32_0 = arith.constant 0 : i32
    %c0_i32_1 = arith.constant 0 : i32
    return %c0_i32, %c0_i32_0 : i32, i32
  }
  func.func @transform_3(%arg0: i32, %arg1: memref<2x3xi32, #tpu.memory_space<smem>>) -> (i32, i32) {
    %c0_i32 = arith.constant 0 : i32
    %c0_i32_0 = arith.constant 0 : i32
    %c0_i32_1 = arith.constant 0 : i32
    return %c0_i32, %c0_i32_0 : i32, i32
  }
  func.func @transform_4(%arg0: i32, %arg1: memref<2x3xi32, #tpu.memory_space<smem>>) -> (i32, i32) {
    %c0_i32 = arith.constant 0 : i32
    %c0_i32_0 = arith.constant 0 : i32
    %c0_i32_1 = arith.constant 0 : i32
    return %c0_i32, %c0_i32_0 : i32, i32
  }
  func.func @transform_5(%arg0: i32, %arg1: memref<2x3xi32, #tpu.memory_space<smem>>) -> (i32, i32) {
    %c0_i32 = arith.constant 0 : i32
    %c0_i32_0 = arith.constant 0 : i32
    %c0_i32_1 = arith.constant 0 : i32
    return %c0_i32, %c0_i32_0 : i32, i32
  }
  func.func @transform_6(%arg0: i32, %arg1: memref<2x3xi32, #tpu.memory_space<smem>>) -> (i32, i32) {
    %c0_i32 = arith.constant 0 : i32
    %c0_i32_0 = arith.constant 0 : i32
    %c0_i32_1 = arith.constant 0 : i32
    return %c0_i32, %c0_i32_0 : i32, i32
  }
  func.func @transform_7(%arg0: i32, %arg1: memref<2x3xi32, #tpu.memory_space<smem>>) -> (i32, i32) {
    %c0_i32 = arith.constant 0 : i32
    %c0_i32_0 = arith.constant 0 : i32
    %c0_i32_1 = arith.constant 0 : i32
    return %c0_i32, %c0_i32_0 : i32, i32
  }
  func.func @transform_8(%arg0: i32, %arg1: memref<2x3xi32, #tpu.memory_space<smem>>) -> (i32, i32) {
    %c0_i32 = arith.constant 0 : i32
    %c0_i32_0 = arith.constant 0 : i32
    %c0_i32_1 = arith.constant 0 : i32
    return %c0_i32, %c0_i32_0 : i32, i32
  }
  func.func @transform_9(%arg0: i32, %arg1: memref<2x3xi32, #tpu.memory_space<smem>>) -> (i32, i32) {
    %c0_i32 = arith.constant 0 : i32
    %c0_i32_0 = arith.constant 0 : i32
    %c0_i32_1 = arith.constant 0 : i32
    return %c0_i32, %c0_i32_0 : i32, i32
  }
  func.func @transform_10(%arg0: i32, %arg1: memref<2x3xi32, #tpu.memory_space<smem>>) -> (i32, i32) {
    %c0_i32 = arith.constant 0 : i32
    %c0_i32_0 = arith.constant 0 : i32
    %c0_i32_1 = arith.constant 0 : i32
    return %c0_i32, %c0_i32_0 : i32, i32
  }
  func.func @transform_11(%arg0: i32, %arg1: memref<2x3xi32, #tpu.memory_space<smem>>) -> (i32, i32) {
    %c0_i32 = arith.constant 0 : i32
    %c0_i32_0 = arith.constant 0 : i32
    %c0_i32_1 = arith.constant 0 : i32
    return %c0_i32, %c0_i32_0 : i32, i32
  }
  func.func @transform_12(%arg0: i32, %arg1: memref<2x3xi32, #tpu.memory_space<smem>>) -> (i32, i32) {
    %c0_i32 = arith.constant 0 : i32
    %c0_i32_0 = arith.constant 0 : i32
    %c0_i32_1 = arith.constant 0 : i32
    return %c0_i32, %c0_i32_0 : i32, i32
  }
  func.func @transform_13(%arg0: i32, %arg1: memref<2x3xi32, #tpu.memory_space<smem>>) -> (i32, i32) {
    %c0_i32 = arith.constant 0 : i32
    %c0_i32_0 = arith.constant 0 : i32
    %c0_i32_1 = arith.constant 0 : i32
    return %c0_i32, %c0_i32_0 : i32, i32
  }
  func.func @transform_14(%arg0: i32, %arg1: memref<2x3xi32, #tpu.memory_space<smem>>) -> (i32, i32, i32) {
    %c0_i32 = arith.constant 0 : i32
    %c0_i32_0 = arith.constant 0 : i32
    %c0_i32_1 = arith.constant 0 : i32
    return %arg0, %c0_i32, %c0_i32_0 : i32, i32, i32
  }
}

</mosaic_0001>

<llo_original>
// kernel: cross_bert_w_embeds_forward.1
$region0: #{cross_bert_w_embeds_forward.1}
  #allocation0 [shape = 'u32[]', space=smem, size = 0x4, offset = 0x4, fixed_abs, tag = 'smem constant byte address 0x4 - core index']
  #allocation1 [shape = 'u32[144,128]{1,0:T(1,128)}', space=vmem, size = 0x12000, scoped, tag = 'internal scratch']
  #allocation2 [shape = 'f32[8,32]{1,0:T(8,128)}', space=vmem, size = 0x1000, scoped, tag = 'scratch operand']
  #allocation3 [shape = 's32[1]{0}', space=sflag, size = 0x4, scoped, tag = 'scoped memory for cross_bert_w_embeds_forward.1']
  #allocation4 [shape = 'u8[1024]{0}', space=smem, size = 0x400, scoped, tag = 'prefetched SMEM operand 0']
  %s0 = inlined_call_operand.vmem [shape: s32[2,3], index: 0, kind: input, shape index: {}]
  %s1 = inlined_call_operand.vmem [shape: f32[2,8,32], index: 1, kind: input, shape index: {}]
  %s2 = inlined_call_operand.vmem [shape: f32[2,1,8], index: 2, kind: input, shape index: {}]
  %s3 = inlined_call_operand.vmem [shape: f32[32,96], index: 3, kind: input, shape index: {}]
  %s4 = inlined_call_operand.vmem [shape: f32[1,96], index: 4, kind: input, shape index: {}]
  %s5 = inlined_call_operand.vmem [shape: f32[32,32], index: 5, kind: input, shape index: {}]
  %s6 = inlined_call_operand.vmem [shape: f32[1,32], index: 6, kind: input, shape index: {}]
  %s7 = inlined_call_operand.vmem [shape: f32[1,32], index: 7, kind: input, shape index: {}]
  %s8 = inlined_call_operand.vmem [shape: f32[1,32], index: 8, kind: input, shape index: {}]
  %s9 = inlined_call_operand.vmem [shape: f32[32,64], index: 9, kind: input, shape index: {}]
  %s10 = inlined_call_operand.vmem [shape: f32[1,64], index: 10, kind: input, shape index: {}]
  %s11 = inlined_call_operand.vmem [shape: f32[64,32], index: 11, kind: input, shape index: {}]
  %s12 = inlined_call_operand.vmem [shape: f32[1,32], index: 12, kind: input, shape index: {}]
  %s13 = inlined_call_operand.vmem [shape: f32[1,32], index: 13, kind: input, shape index: {}]
  %s14 = inlined_call_operand.vmem [shape: f32[1,32], index: 14, kind: input, shape index: {}]
  %s15 = inlined_call_operand.vmem [shape: f32[2,1,32], index: 15, kind: output, shape index: {}]
  %s16 = sld [smem:[#allocation0]]
  $region89: #{cross_bert_w_embeds_forward.1} parent=0
    _
  %s18 = ssub.s32 1, %s16
  %s19 = scalar_select 0, %s18, %s16
  %s20 = sshll.u32 %s0, 4
  %s21 = int_to_ptr.vmem [resolvable:$true] %s20
  %23 = dma.vmem_to_smem %s21, 32, [#allocation4], [#allocation3]
  %24 = dma.done [#allocation3], 32
  %25 = sfence
  loop: start=0, step=1, limit=4
  $region2: #{cross_bert_w_embeds_forward.1} parent=0 // loop_pre_header
    _
  $region3: #{cross_bert_w_embeds_forward.1} parent=0 // loop_header
    %s27 = sphi 0, %s31
    %p28 = scmp.ge.s32.totalorder %s27, 4
    %s37 = sphi 0, %s39
    %s40 = sphi 0, %s37
    %s41 = sphi 0, %s40
    %s57 = sphi 0, %s41
    %s63 = sphi 0, %s65
    %s66 = sphi 0, %s63
    %s67 = sphi 0, %s66
    %s83 = sphi 0, %s67
    %s87 = sphi 0, %s87
    %s89 = sphi 0, %s87
    %s90 = sphi 0, %s89
    %s104 = sphi 0, %s90
    %s108 = sphi 0, %s108
    %s110 = sphi 0, %s108
    %s111 = sphi 0, %s110
    %s125 = sphi 0, %s111
    %s129 = sphi 0, %s129
    %s131 = sphi 0, %s129
    %s132 = sphi 0, %s131
    %s146 = sphi 0, %s132
    %s150 = sphi 0, %s150
    %s152 = sphi 0, %s150
    %s153 = sphi 0, %s152
    %s167 = sphi 0, %s153
    %s171 = sphi 0, %s171
    %s173 = sphi 0, %s171
    %s174 = sphi 0, %s173
    %s188 = sphi 0, %s174
    %s192 = sphi 0, %s192
    %s194 = sphi 0, %s192
    %s195 = sphi 0, %s194
    %s209 = sphi 0, %s195
    %s213 = sphi 0, %s213
    %s215 = sphi 0, %s213
    %s216 = sphi 0, %s215
    %s230 = sphi 0, %s216
    %s234 = sphi 0, %s234
    %s236 = sphi 0, %s234
    %s237 = sphi 0, %s236
    %s251 = sphi 0, %s237
    %s255 = sphi 0, %s255
    %s257 = sphi 0, %s255
    %s258 = sphi 0, %s257
    %s272 = sphi 0, %s258
    %s276 = sphi 0, %s276
    %s278 = sphi 0, %s276
    %s279 = sphi 0, %s278
    %s293 = sphi 0, %s279
    %s297 = sphi 0, %s297
    %s299 = sphi 0, %s297
    %s300 = sphi 0, %s299
    %s314 = sphi 0, %s300
    %s318 = sphi 0, %s318
    %s320 = sphi 0, %s318
    %s321 = sphi 0, %s320
    %s335 = sphi 0, %s321
    %s341 = sphi 0, %s343
    %s344 = sphi 0, %s341
    %s345 = sphi 0, %s344
    %s361 = sphi 0, %s345
  $region4: #{cross_bert_w_embeds_forward.1} parent=0 // loop_header_branch
    %30 = sbr.rel (%p28) target = $region8
  $region5: #{cross_bert_w_embeds_forward.1} parent=0 // loop_body
    %s32 = ssub.s32 %s27, 1
    %s33 = ssub.s32 %s27, 2
    %s34 = sadd.s32 %s27, 1
    %s35 = ssub.s32 %s27, %s34
    %p36 = scmp.eq.s32.totalorder %s35, 0
    %s38 = sadd.s32 %s37, 1
    %s39 = scalar_select %p36, %s37, %s38
    %p42 = pneg %p36
    %p43 = scmp.eq.s32.totalorder %s27, 1
    %p44 = por %p42, %p43
    %p45 = scmp.ne.s32.totalorder %s37, %s40
    %p46 = scmp.eq.s32.totalorder %s27, 0
    %p47 = por %p45, %p46
    %p48 = scmp.ne.s32.totalorder %s37, %s40
    %p49 = scmp.eq.s32.totalorder %s32, 1
    %p50 = por %p48, %p49
    %p51 = scmp.ne.s32.totalorder %s40, %s41
    %p52 = scmp.eq.s32.totalorder %s32, 0
    %p53 = por %p51, %p52
    %p54 = scmp.ne.s32.totalorder %s40, %s41
    %p55 = scmp.eq.s32.totalorder %s33, 1
    %p56 = por %p54, %p55
    %p58 = scmp.ne.s32.totalorder %s41, %s57
    %p59 = scmp.eq.s32.totalorder %s33, 0
    %p60 = por %p58, %p59
    %s61 = ssub.s32 %s27, %s34
    %p62 = scmp.eq.s32.totalorder %s61, 0
    %s64 = sadd.s32 %s63, 1
    %s65 = scalar_select %p62, %s63, %s64
    %p68 = pneg %p62
    %p69 = scmp.eq.s32.totalorder %s27, 1
    %p70 = por %p68, %p69
    %p71 = scmp.ne.s32.totalorder %s63, %s66
    %p72 = scmp.eq.s32.totalorder %s27, 0
    %p73 = por %p71, %p72
    %p74 = scmp.ne.s32.totalorder %s63, %s66
    %p75 = scmp.eq.s32.totalorder %s32, 1
    %p76 = por %p74, %p75
    %p77 = scmp.ne.s32.totalorder %s66, %s67
    %p78 = scmp.eq.s32.totalorder %s32, 0
    %p79 = por %p77, %p78
    %p80 = scmp.ne.s32.totalorder %s66, %s67
    %p81 = scmp.eq.s32.totalorder %s33, 1
    %p82 = por %p80, %p81
    %p84 = scmp.ne.s32.totalorder %s67, %s83
    %p85 = scmp.eq.s32.totalorder %s33, 0
    %p86 = por %p84, %p85
    %s88 = sadd.s32 %s87, 1
    %p91 = scmp.eq.s32.totalorder %s27, 1
    %p92 = scmp.ne.s32.totalorder %s87, %s89
    %p93 = scmp.eq.s32.totalorder %s27, 0
    %p94 = por %p92, %p93
    %p95 = scmp.ne.s32.totalorder %s87, %s89
    %p96 = scmp.eq.s32.totalorder %s32, 1
    %p97 = por %p95, %p96
    %p98 = scmp.ne.s32.totalorder %s89, %s90
    %p99 = scmp.eq.s32.totalorder %s32, 0
    %p100 = por %p98, %p99
    %p101 = scmp.ne.s32.totalorder %s89, %s90
    %p102 = scmp.eq.s32.totalorder %s33, 1
    %p103 = por %p101, %p102
    %p105 = scmp.ne.s32.totalorder %s90, %s104
    %p106 = scmp.eq.s32.totalorder %s33, 0
    %p107 = por %p105, %p106
    %s109 = sadd.s32 %s108, 1
    %p112 = scmp.eq.s32.totalorder %s27, 1
    %p113 = scmp.ne.s32.totalorder %s108, %s110
    %p114 = scmp.eq.s32.totalorder %s27, 0
    %p115 = por %p113, %p114
    %p116 = scmp.ne.s32.totalorder %s108, %s110
    %p117 = scmp.eq.s32.totalorder %s32, 1
    %p118 = por %p116, %p117
    %p119 = scmp.ne.s32.totalorder %s110, %s111
    %p120 = scmp.eq.s32.totalorder %s32, 0
    %p121 = por %p119, %p120
    %p122 = scmp.ne.s32.totalorder %s110, %s111
    %p123 = scmp.eq.s32.totalorder %s33, 1
    %p124 = por %p122, %p123
    %p126 = scmp.ne.s32.totalorder %s111, %s125
    %p127 = scmp.eq.s32.totalorder %s33, 0
    %p128 = por %p126, %p127
    %s130 = sadd.s32 %s129, 1
    %p133 = scmp.eq.s32.totalorder %s27, 1
    %p134 = scmp.ne.s32.totalorder %s129, %s131
    %p135 = scmp.eq.s32.totalorder %s27, 0
    %p136 = por %p134, %p135
    %p137 = scmp.ne.s32.totalorder %s129, %s131
    %p138 = scmp.eq.s32.totalorder %s32, 1
    %p139 = por %p137, %p138
    %p140 = scmp.ne.s32.totalorder %s131, %s132
    %p141 = scmp.eq.s32.totalorder %s32, 0
    %p142 = por %p140, %p141
    %p143 = scmp.ne.s32.totalorder %s131, %s132
    %p144 = scmp.eq.s32.totalorder %s33, 1
    %p145 = por %p143, %p144
    %p147 = scmp.ne.s32.totalorder %s132, %s146
    %p148 = scmp.eq.s32.totalorder %s33, 0
    %p149 = por %p147, %p148
    %s151 = sadd.s32 %s150, 1
    %p154 = scmp.eq.s32.totalorder %s27, 1
    %p155 = scmp.ne.s32.totalorder %s150, %s152
    %p156 = scmp.eq.s32.totalorder %s27, 0
    %p157 = por %p155, %p156
    %p158 = scmp.ne.s32.totalorder %s150, %s152
    %p159 = scmp.eq.s32.totalorder %s32, 1
    %p160 = por %p158, %p159
    %p161 = scmp.ne.s32.totalorder %s152, %s153
    %p162 = scmp.eq.s32.totalorder %s32, 0
    %p163 = por %p161, %p162
    %p164 = scmp.ne.s32.totalorder %s152, %s153
    %p165 = scmp.eq.s32.totalorder %s33, 1
    %p166 = por %p164, %p165
    %p168 = scmp.ne.s32.totalorder %s153, %s167
    %p169 = scmp.eq.s32.totalorder %s33, 0
    %p170 = por %p168, %p169
    %s172 = sadd.s32 %s171, 1
    %p175 = scmp.eq.s32.totalorder %s27, 1
    %p176 = scmp.ne.s32.totalorder %s171, %s173
    %p177 = scmp.eq.s32.totalorder %s27, 0
    %p178 = por %p176, %p177
    %p179 = scmp.ne.s32.totalorder %s171, %s173
    %p180 = scmp.eq.s32.totalorder %s32, 1
    %p181 = por %p179, %p180
    %p182 = scmp.ne.s32.totalorder %s173, %s174
    %p183 = scmp.eq.s32.totalorder %s32, 0
    %p184 = por %p182, %p183
    %p185 = scmp.ne.s32.totalorder %s173, %s174
    %p186 = scmp.eq.s32.totalorder %s33, 1
    %p187 = por %p185, %p186
    %p189 = scmp.ne.s32.totalorder %s174, %s188
    %p190 = scmp.eq.s32.totalorder %s33, 0
    %p191 = por %p189, %p190
    %s193 = sadd.s32 %s192, 1
    %p196 = scmp.eq.s32.totalorder %s27, 1
    %p197 = scmp.ne.s32.totalorder %s192, %s194
    %p198 = scmp.eq.s32.totalorder %s27, 0
    %p199 = por %p197, %p198
    %p200 = scmp.ne.s32.totalorder %s192, %s194
    %p201 = scmp.eq.s32.totalorder %s32, 1
    %p202 = por %p200, %p201
    %p203 = scmp.ne.s32.totalorder %s194, %s195
    %p204 = scmp.eq.s32.totalorder %s32, 0
    %p205 = por %p203, %p204
    %p206 = scmp.ne.s32.totalorder %s194, %s195
    %p207 = scmp.eq.s32.totalorder %s33, 1
    %p208 = por %p206, %p207
    %p210 = scmp.ne.s32.totalorder %s195, %s209
    %p211 = scmp.eq.s32.totalorder %s33, 0
    %p212 = por %p210, %p211
    %s214 = sadd.s32 %s213, 1
    %p217 = scmp.eq.s32.totalorder %s27, 1
    %p218 = scmp.ne.s32.totalorder %s213, %s215
    %p219 = scmp.eq.s32.totalorder %s27, 0
    %p220 = por %p218, %p219
    %p221 = scmp.ne.s32.totalorder %s213, %s215
    %p222 = scmp.eq.s32.totalorder %s32, 1
    %p223 = por %p221, %p222
    %p224 = scmp.ne.s32.totalorder %s215, %s216
    %p225 = scmp.eq.s32.totalorder %s32, 0
    %p226 = por %p224, %p225
    %p227 = scmp.ne.s32.totalorder %s215, %s216
    %p228 = scmp.eq.s32.totalorder %s33, 1
    %p229 = por %p227, %p228
    %p231 = scmp.ne.s32.totalorder %s216, %s230
    %p232 = scmp.eq.s32.totalorder %s33, 0
    %p233 = por %p231, %p232
    %s235 = sadd.s32 %s234, 1
    %p238 = scmp.eq.s32.totalorder %s27, 1
    %p239 = scmp.ne.s32.totalorder %s234, %s236
    %p240 = scmp.eq.s32.totalorder %s27, 0
    %p241 = por %p239, %p240
    %p242 = scmp.ne.s32.totalorder %s234, %s236
    %p243 = scmp.eq.s32.totalorder %s32, 1
    %p244 = por %p242, %p243
    %p245 = scmp.ne.s32.totalorder %s236, %s237
    %p246 = scmp.eq.s32.totalorder %s32, 0
    %p247 = por %p245, %p246
    %p248 = scmp.ne.s32.totalorder %s236, %s237
    %p249 = scmp.eq.s32.totalorder %s33, 1
    %p250 = por %p248, %p249
    %p252 = scmp.ne.s32.totalorder %s237, %s251
    %p253 = scmp.eq.s32.totalorder %s33, 0
    %p254 = por %p252, %p253
    %s256 = sadd.s32 %s255, 1
    %p259 = scmp.eq.s32.totalorder %s27, 1
    %p260 = scmp.ne.s32.totalorder %s255, %s257
    %p261 = scmp.eq.s32.totalorder %s27, 0
    %p262 = por %p260, %p261
    %p263 = scmp.ne.s32.totalorder %s255, %s257
    %p264 = scmp.eq.s32.totalorder %s32, 1
    %p265 = por %p263, %p264
    %p266 = scmp.ne.s32.totalorder %s257, %s258
    %p267 = scmp.eq.s32.totalorder %s32, 0
    %p268 = por %p266, %p267
    %p269 = scmp.ne.s32.totalorder %s257, %s258
    %p270 = scmp.eq.s32.totalorder %s33, 1
    %p271 = por %p269, %p270
    %p273 = scmp.ne.s32.totalorder %s258, %s272
    %p274 = scmp.eq.s32.totalorder %s33, 0
    %p275 = por %p273, %p274
    %s277 = sadd.s32 %s276, 1
    %p280 = scmp.eq.s32.totalorder %s27, 1
    %p281 = scmp.ne.s32.totalorder %s276, %s278
    %p282 = scmp.eq.s32.totalorder %s27, 0
    %p283 = por %p281, %p282
    %p284 = scmp.ne.s32.totalorder %s276, %s278
    %p285 = scmp.eq.s32.totalorder %s32, 1
    %p286 = por %p284, %p285
    %p287 = scmp.ne.s32.totalorder %s278, %s279
    %p288 = scmp.eq.s32.totalorder %s32, 0
    %p289 = por %p287, %p288
    %p290 = scmp.ne.s32.totalorder %s278, %s279
    %p291 = scmp.eq.s32.totalorder %s33, 1
    %p292 = por %p290, %p291
    %p294 = scmp.ne.s32.totalorder %s279, %s293
    %p295 = scmp.eq.s32.totalorder %s33, 0
    %p296 = por %p294, %p295
    %s298 = sadd.s32 %s297, 1
    %p301 = scmp.eq.s32.totalorder %s27, 1
    %p302 = scmp.ne.s32.totalorder %s297, %s299
    %p303 = scmp.eq.s32.totalorder %s27, 0
    %p304 = por %p302, %p303
    %p305 = scmp.ne.s32.totalorder %s297, %s299
    %p306 = scmp.eq.s32.totalorder %s32, 1
    %p307 = por %p305, %p306
    %p308 = scmp.ne.s32.totalorder %s299, %s300
    %p309 = scmp.eq.s32.totalorder %s32, 0
    %p310 = por %p308, %p309
    %p311 = scmp.ne.s32.totalorder %s299, %s300
    %p312 = scmp.eq.s32.totalorder %s33, 1
    %p313 = por %p311, %p312
    %p315 = scmp.ne.s32.totalorder %s300, %s314
    %p316 = scmp.eq.s32.totalorder %s33, 0
    %p317 = por %p315, %p316
    %s319 = sadd.s32 %s318, 1
    %p322 = scmp.eq.s32.totalorder %s27, 1
    %p323 = scmp.ne.s32.totalorder %s318, %s320
    %p324 = scmp.eq.s32.totalorder %s27, 0
    %p325 = por %p323, %p324
    %p326 = scmp.ne.s32.totalorder %s318, %s320
    %p327 = scmp.eq.s32.totalorder %s32, 1
    %p328 = por %p326, %p327
    %p329 = scmp.ne.s32.totalorder %s320, %s321
    %p330 = scmp.eq.s32.totalorder %s32, 0
    %p331 = por %p329, %p330
    %p332 = scmp.ne.s32.totalorder %s320, %s321
    %p333 = scmp.eq.s32.totalorder %s33, 1
    %p334 = por %p332, %p333
    %p336 = scmp.ne.s32.totalorder %s321, %s335
    %p337 = scmp.eq.s32.totalorder %s33, 0
    %p338 = por %p336, %p337
    %s339 = ssub.s32 %s27, %s34
    %p340 = scmp.eq.s32.totalorder %s339, 0
    %s342 = sadd.s32 %s341, 1
    %s343 = scalar_select %p340, %s341, %s342
    %p346 = pneg %p340
    %p347 = scmp.eq.s32.totalorder %s27, 1
    %p348 = por %p346, %p347
    %p349 = scmp.ne.s32.totalorder %s341, %s344
    %p350 = scmp.eq.s32.totalorder %s27, 0
    %p351 = por %p349, %p350
    %p352 = scmp.ne.s32.totalorder %s341, %s344
    %p353 = scmp.eq.s32.totalorder %s32, 1
    %p354 = por %p352, %p353
    %p355 = scmp.ne.s32.totalorder %s344, %s345
    %p356 = scmp.eq.s32.totalorder %s32, 0
    %p357 = por %p355, %p356
    %p358 = scmp.ne.s32.totalorder %s344, %s345
    %p359 = scmp.eq.s32.totalorder %s33, 1
    %p360 = por %p358, %p359
    %p362 = scmp.ne.s32.totalorder %s345, %s361
    %p363 = scmp.eq.s32.totalorder %s33, 0
    %p364 = por %p362, %p363
    %p365 = scmp.le.s32.totalorder 1, %s27
    %p366 = scmp.lt.s32.totalorder %s27, 3
    %p367 = pnand %p365, %p366
    %p368 = pneg %p367
    // Predicated region
    $region9: #{cross_bert_w_embeds_forward.1} parent=5 // pred_check
      _
    $region10: #{cross_bert_w_embeds_forward.1} parent=5 // pred_check_branch
      %370 = sbr.rel (%p367) target = $region12
    $region11: #{cross_bert_w_embeds_forward.1} parent=5 // pred_region
      %s371 = ssub.s32 %s27, 1
      // Predicated region
      $region13: #{cross_bert_w_embeds_forward.1} parent=11 // pred_check
        %p372 = pneg %p100
      $region14: #{cross_bert_w_embeds_forward.1} parent=11 // pred_check_branch
        %374 = sbr.rel (%p372) target = $region16
      $region15: #{cross_bert_w_embeds_forward.1} parent=11 // pred_region
        _
      $region16: #{cross_bert_w_embeds_forward.1} parent=11 // pred_fallthru
        _
      // Predicated region
      $region17: #{cross_bert_w_embeds_forward.1} parent=11 // pred_check
        %p375 = pneg %p121
      $region18: #{cross_bert_w_embeds_forward.1} parent=11 // pred_check_branch
        %377 = sbr.rel (%p375) target = $region20
      $region19: #{cross_bert_w_embeds_forward.1} parent=11 // pred_region
        _
      $region20: #{cross_bert_w_embeds_forward.1} parent=11 // pred_fallthru
        _
      // Predicated region
      $region21: #{cross_bert_w_embeds_forward.1} parent=11 // pred_check
        %p378 = pneg %p142
      $region22: #{cross_bert_w_embeds_forward.1} parent=11 // pred_check_branch
        %380 = sbr.rel (%p378) target = $region24
      $region23: #{cross_bert_w_embeds_forward.1} parent=11 // pred_region
        _
      $region24: #{cross_bert_w_embeds_forward.1} parent=11 // pred_fallthru
        _
      // Predicated region
      $region25: #{cross_bert_w_embeds_forward.1} parent=11 // pred_check
        %p381 = pneg %p163
      $region26: #{cross_bert_w_embeds_forward.1} parent=11 // pred_check_branch
        %383 = sbr.rel (%p381) target = $region28
      $region27: #{cross_bert_w_embeds_forward.1} parent=11 // pred_region
        _
      $region28: #{cross_bert_w_embeds_forward.1} parent=11 // pred_fallthru
        _
      // Predicated region
      $region29: #{cross_bert_w_embeds_forward.1} parent=11 // pred_check
        %p384 = pneg %p184
      $region30: #{cross_bert_w_embeds_forward.1} parent=11 // pred_check_branch
        %386 = sbr.rel (%p384) target = $region32
      $region31: #{cross_bert_w_embeds_forward.1} parent=11 // pred_region
        _
      $region32: #{cross_bert_w_embeds_forward.1} parent=11 // pred_fallthru
        _
      // Predicated region
      $region33: #{cross_bert_w_embeds_forward.1} parent=11 // pred_check
        %p387 = pneg %p205
      $region34: #{cross_bert_w_embeds_forward.1} parent=11 // pred_check_branch
        %389 = sbr.rel (%p387) target = $region36
      $region35: #{cross_bert_w_embeds_forward.1} parent=11 // pred_region
        _
      $region36: #{cross_bert_w_embeds_forward.1} parent=11 // pred_fallthru
        _
      // Predicated region
      $region37: #{cross_bert_w_embeds_forward.1} parent=11 // pred_check
        %p390 = pneg %p226
      $region38: #{cross_bert_w_embeds_forward.1} parent=11 // pred_check_branch
        %392 = sbr.rel (%p390) target = $region40
      $region39: #{cross_bert_w_embeds_forward.1} parent=11 // pred_region
        _
      $region40: #{cross_bert_w_embeds_forward.1} parent=11 // pred_fallthru
        _
      // Predicated region
      $region41: #{cross_bert_w_embeds_forward.1} parent=11 // pred_check
        %p393 = pneg %p247
      $region42: #{cross_bert_w_embeds_forward.1} parent=11 // pred_check_branch
        %395 = sbr.rel (%p393) target = $region44
      $region43: #{cross_bert_w_embeds_forward.1} parent=11 // pred_region
        _
      $region44: #{cross_bert_w_embeds_forward.1} parent=11 // pred_fallthru
        _
      // Predicated region
      $region45: #{cross_bert_w_embeds_forward.1} parent=11 // pred_check
        %p396 = pneg %p268
      $region46: #{cross_bert_w_embeds_forward.1} parent=11 // pred_check_branch
        %398 = sbr.rel (%p396) target = $region48
      $region47: #{cross_bert_w_embeds_forward.1} parent=11 // pred_region
        _
      $region48: #{cross_bert_w_embeds_forward.1} parent=11 // pred_fallthru
        _
      // Predicated region
      $region49: #{cross_bert_w_embeds_forward.1} parent=11 // pred_check
        %p399 = pneg %p289
      $region50: #{cross_bert_w_embeds_forward.1} parent=11 // pred_check_branch
        %401 = sbr.rel (%p399) target = $region52
      $region51: #{cross_bert_w_embeds_forward.1} parent=11 // pred_region
        _
      $region52: #{cross_bert_w_embeds_forward.1} parent=11 // pred_fallthru
        _
      // Predicated region
      $region53: #{cross_bert_w_embeds_forward.1} parent=11 // pred_check
        %p402 = pneg %p310
      $region54: #{cross_bert_w_embeds_forward.1} parent=11 // pred_check_branch
        %404 = sbr.rel (%p402) target = $region56
      $region55: #{cross_bert_w_embeds_forward.1} parent=11 // pred_region
        _
      $region56: #{cross_bert_w_embeds_forward.1} parent=11 // pred_fallthru
        _
      // Predicated region
      $region57: #{cross_bert_w_embeds_forward.1} parent=11 // pred_check
        %p405 = pneg %p331
      $region58: #{cross_bert_w_embeds_forward.1} parent=11 // pred_check_branch
        %407 = sbr.rel (%p405) target = $region60
      $region59: #{cross_bert_w_embeds_forward.1} parent=11 // pred_region
        _
      $region60: #{cross_bert_w_embeds_forward.1} parent=11 // pred_fallthru
        _
    $region12: #{cross_bert_w_embeds_forward.1} parent=5 // pred_fallthru
      _
    %p408 = scmp.lt.s32.totalorder %s27, 2
    // Predicated region
    $region61: #{cross_bert_w_embeds_forward.1} parent=5 // pred_check
      %p409 = pneg %p408
    $region62: #{cross_bert_w_embeds_forward.1} parent=5 // pred_check_branch
      %411 = sbr.rel (%p409) target = $region64
    $region63: #{cross_bert_w_embeds_forward.1} parent=5 // pred_region
      // Predicated region
      $region65: #{cross_bert_w_embeds_forward.1} parent=63 // pred_check
        %p412 = pneg %p47
      $region66: #{cross_bert_w_embeds_forward.1} parent=63 // pred_check_branch
        %414 = sbr.rel (%p412) target = $region68
      $region67: #{cross_bert_w_embeds_forward.1} parent=63 // pred_region
        %p415 = scmp.lt.s32.totalorder %s27, 1
        %s416 = scalar_select %p415, %s27, 1
        %s417 = smul.addr %s416, 8
        %s418 = scalar_lea.vmem %s1, %s417
      $region68: #{cross_bert_w_embeds_forward.1} parent=63 // pred_fallthru
        _
      // Predicated region
      $region69: #{cross_bert_w_embeds_forward.1} parent=63 // pred_check
        %p419 = pneg %p73
      $region70: #{cross_bert_w_embeds_forward.1} parent=63 // pred_check_branch
        %421 = sbr.rel (%p419) target = $region72
      $region71: #{cross_bert_w_embeds_forward.1} parent=63 // pred_region
        %p422 = scmp.lt.s32.totalorder %s27, 1
        %s423 = scalar_select %p422, %s27, 1
        %s424 = scalar_lea.vmem %s2, %s423
      $region72: #{cross_bert_w_embeds_forward.1} parent=63 // pred_fallthru
        _
    $region64: #{cross_bert_w_embeds_forward.1} parent=5 // pred_fallthru
      _
    %p425 = scmp.le.s32.totalorder 1, %s27
    %p426 = scmp.lt.s32.totalorder %s27, 3
    %p427 = pnand %p425, %p426
    %p428 = pneg %p427
    // Predicated region
    $region73: #{cross_bert_w_embeds_forward.1} parent=5 // pred_check
      _
    $region74: #{cross_bert_w_embeds_forward.1} parent=5 // pred_check_branch
      %430 = sbr.rel (%p427) target = $region76
    $region75: #{cross_bert_w_embeds_forward.1} parent=5 // pred_region
      %s431 = ssub.s32 %s27, 1
      %p432 = scmp.lt.s32.totalorder %s32, 1
      %s433 = scalar_select %p432, %s32, 1
      %s434 = smul.addr %s433, 8
      %s435 = scalar_lea.vmem %s1, %s434
      %p436 = pneg %p53
      %p437 = pneg %p50
      %p438 = scmp.lt.s32.totalorder %s32, 1
      %s439 = scalar_select %p438, %s32, 1
      %s440 = scalar_lea.vmem %s2, %s439
      %p441 = pneg %p79
      %p442 = pneg %p76
      %p443 = pneg %p100
      %p444 = pneg %p97
      %p445 = pneg %p121
      %p446 = pneg %p118
      %p447 = pneg %p142
      %p448 = pneg %p139
      %p449 = pneg %p163
      %p450 = pneg %p160
      %p451 = pneg %p184
      %p452 = pneg %p181
      %p453 = pneg %p205
      %p454 = pneg %p202
      %p455 = pneg %p226
      %p456 = pneg %p223
      %p457 = pneg %p247
      %p458 = pneg %p244
      %p459 = pneg %p268
      %p460 = pneg %p265
      %p461 = pneg %p289
      %p462 = pneg %p286
      %p463 = pneg %p310
      %p464 = pneg %p307
      %p465 = pneg %p331
      %p466 = pneg %p328
      %p467 = pneg %p357
      %p468 = pneg %p354
      %p469 = scmp.lt.s32.totalorder %s32, 1
      %s470 = scalar_select %p469, %s32, 1
      %s471 = scalar_lea.vmem %s15, %s470
      %p472 = scmp.lt.s32.totalorder %s32, 1
      %s473 = scalar_select %p472, %s32, 1
      %s474 = smul.addr %s473, 8
      %s475 = scalar_lea.vmem %s1, %s474
      %p476 = scmp.lt.s32.totalorder %s32, 1
      %s477 = scalar_select %p476, %s32, 1
      %s478 = scalar_lea.vmem %s2, %s477
      %p479 = scmp.lt.s32.totalorder %s32, 1
      %s480 = scalar_select %p479, %s32, 1
      %s481 = scalar_lea.vmem %s15, %s480
      %v482 = vld [vmem:[%s475] sm:$0xff]
      %v483 = vld [vmem:[%s3] sm:$0xff]
      %v484 = vld [vmem:[%s3 + $0x8] sm:$0xff]
      %v485 = vld [vmem:[%s3 + $0x10] sm:$0xff]
      %v486 = vld [vmem:[%s3 + $0x18] sm:$0xff]
      %v487 = vld [vmem:[%s4] sm:$0x1]
      %v489 = vlaneseq
      %v490 = vshrl.u32 %v489, 7
      %v491 = vsub.s32 0, %v490
      %v492 = vrot.slane %v487, %v491
      %vm494 = vcmask 261120
      %v496 = vsel %vm494, %v482, 0
      %498 = vmatprep.subr.mxu0 0.0
      %499 = vmatpush1.msra.mxu0 0.0
      %500 = vmatprep.subr.mxu0 0.0
      %501 = vmatpush1.msra.mxu0 0.0
      %502 = vmatprep.subr.mxu0 0.0
      %503 = vmatpush1.msra.mxu0 0.0
      %504 = vmatprep.subr.mxu0 0.0
      %505 = vmatpush1.msra.mxu0 0.0
      %506 = vmatprep.subr.mxu0 0.0
      %507 = vmatpush1.msra.mxu0 0.0
      %508 = vmatprep.subr.mxu0 0.0
      %509 = vmatpush1.msra.mxu0 0.0
      %510 = vmatprep.subr.mxu0 0.0
      %511 = vmatpush1.msra.mxu0 0.0
      %512 = vmatprep.subr.mxu0 0.0
      %513 = vmatpush1.msra.mxu0 0.0
      %514 = vmatprep.subr.mxu0 0.0
      %515 = vmatpush1.msra.mxu0 0.0
      %516 = vmatprep.subr.mxu0 0.0
      %517 = vmatpush1.msra.mxu0 0.0
      %518 = vmatprep.subr.mxu0 0.0
      %519 = vmatpush1.msra.mxu0 0.0
      %520 = vmatprep.subr.mxu0 0.0
      %521 = vmatpush1.msra.mxu0 0.0
      %522 = vmatprep.subr.mxu0 0.0
      %523 = vmatpush1.msra.mxu0 %v486
      %524 = vmatprep.subr.mxu0 0.0
      %525 = vmatpush1.msra.mxu0 %v485
      %526 = vmatprep.subr.mxu0 0.0
      %527 = vmatpush1.msra.mxu0 %v484
      %528 = vmatprep.subr.mxu0 0.0
      %529 = vmatpush1.msra.mxu0 %v483
      %530 = vmatprep.subr.mxu0 0.0
      %531 = vmatpush2.msra.mxu0 0.0
      %532 = vmatprep.subr.mxu0 0.0
      %533 = vmatpush2.msra.mxu0 0.0
      %534 = vmatprep.subr.mxu0 0.0
      %535 = vmatpush2.msra.mxu0 0.0
      %536 = vmatprep.subr.mxu0 0.0
      %537 = vmatpush2.msra.mxu0 0.0
      %538 = vmatprep.subr.mxu0 0.0
      %539 = vmatpush2.msra.mxu0 0.0
      %540 = vmatprep.subr.mxu0 0.0
      %541 = vmatpush2.msra.mxu0 0.0
      %542 = vmatprep.subr.mxu0 0.0
      %543 = vmatpush2.msra.mxu0 0.0
      %544 = vmatprep.subr.mxu0 0.0
      %545 = vmatpush2.msra.mxu0 0.0
      %546 = vmatprep.subr.mxu0 0.0
      %547 = vmatpush2.msra.mxu0 0.0
      %548 = vmatprep.subr.mxu0 0.0
      %549 = vmatpush2.msra.mxu0 0.0
      %550 = vmatprep.subr.mxu0 0.0
      %551 = vmatpush2.msra.mxu0 0.0
      %552 = vmatprep.subr.mxu0 0.0
      %553 = vmatpush2.msra.mxu0 0.0
      %554 = vmatprep.subr.mxu0 0.0
      %555 = vmatpush2.msra.mxu0 0.0
      %556 = vmatprep.subr.mxu0 0.0
      %557 = vmatpush2.msra.mxu0 0.0
      %558 = vmatprep.subr.mxu0 0.0
      %559 = vmatpush2.msra.mxu0 0.0
      %560 = vmatprep.subr.mxu0 0.0
      %561 = vmatpush2.msra.mxu0 0.0
      %562 = vmatprep.mubr.f32.mxu0 0.0
      %563 = vmatmul.mubr.f32.gmra.mxu0 %v496
      %v564 = vpop.f32.mrf.mxu0
      %v565 = vadd.f32 %v492, %v564
      %v566 = vpop.f32.mrf.mxu0
      %567 = vdwg.mxu0
      %569 = vrot.lane.b32.xlu0 %v565, 120
      %v570 = vpop.permute.xlu0 %569
      %571 = vrot.lane.b32.xlu0 %v565, 112
      %v572 = vpop.permute.xlu0 %571
      %573 = vrot.lane.b32.xlu0 %v565, 104
      %v574 = vpop.permute.xlu0 %573
      %v575 = vld [vmem:[%s478] sm:$0x1]
      %576 = vrot.lane.b32.xlu0 %v565, 96
      %v577 = vpop.permute.xlu0 %576
      %vm578 = vcmask 64512
      %v579 = vsel %vm578, %v565, 0
      %v581 = vsel %vm578, %v577, 0
      %583 = vmatprep.subr.mxu0 0.0
      %584 = vmatpush1.xpose.msra.mxu0 0.0
      %585 = vmatprep.subr.mxu0 0.0
      %586 = vmatpush1.xpose.msra.mxu0 0.0
      %587 = vmatprep.subr.mxu0 0.0
      %588 = vmatpush1.xpose.msra.mxu0 0.0
      %589 = vmatprep.subr.mxu0 0.0
      %590 = vmatpush1.xpose.msra.mxu0 0.0
      %591 = vmatprep.subr.mxu0 0.0
      %592 = vmatpush1.xpose.msra.mxu0 0.0
      %593 = vmatprep.subr.mxu0 0.0
      %594 = vmatpush1.xpose.msra.mxu0 0.0
      %595 = vmatprep.subr.mxu0 0.0
      %596 = vmatpush1.xpose.msra.mxu0 0.0
      %597 = vmatprep.subr.mxu0 0.0
      %598 = vmatpush1.xpose.msra.mxu0 0.0
      %599 = vmatprep.subr.mxu0 0.0
      %600 = vmatpush1.xpose.msra.mxu0 0.0
      %601 = vmatprep.subr.mxu0 0.0
      %602 = vmatpush1.xpose.msra.mxu0 0.0
      %603 = vmatprep.subr.mxu0 0.0
      %604 = vmatpush1.xpose.msra.mxu0 0.0
      %605 = vmatprep.subr.mxu0 0.0
      %606 = vmatpush1.xpose.msra.mxu0 0.0
      %607 = vmatprep.subr.mxu0 0.0
      %608 = vmatpush1.xpose.msra.mxu0 0.0
      %609 = vmatprep.subr.mxu0 0.0
      %610 = vmatpush1.xpose.msra.mxu0 0.0
      %611 = vmatprep.subr.mxu0 0.0
      %612 = vmatpush1.xpose.msra.mxu0 0.0
      %613 = vmatprep.subr.mxu0 0.0
      %614 = vmatpush1.xpose.msra.mxu0 %v581
      %615 = vmatprep.subr.mxu0 0.0
      %616 = vmatpush2.xpose.msra.mxu0 0.0
      %617 = vmatprep.subr.mxu0 0.0
      %618 = vmatpush2.xpose.msra.mxu0 0.0
      %619 = vmatprep.subr.mxu0 0.0
      %620 = vmatpush2.xpose.msra.mxu0 0.0
      %621 = vmatprep.subr.mxu0 0.0
      %622 = vmatpush2.xpose.msra.mxu0 0.0
      %623 = vmatprep.subr.mxu0 0.0
      %624 = vmatpush2.xpose.msra.mxu0 0.0
      %625 = vmatprep.subr.mxu0 0.0
      %626 = vmatpush2.xpose.msra.mxu0 0.0
      %627 = vmatprep.subr.mxu0 0.0
      %628 = vmatpush2.xpose.msra.mxu0 0.0
      %629 = vmatprep.subr.mxu0 0.0
      %630 = vmatpush2.xpose.msra.mxu0 0.0
      %631 = vmatprep.subr.mxu0 0.0
      %632 = vmatpush2.xpose.msra.mxu0 0.0
      %633 = vmatprep.subr.mxu0 0.0
      %634 = vmatpush2.xpose.msra.mxu0 0.0
      %635 = vmatprep.subr.mxu0 0.0
      %636 = vmatpush2.xpose.msra.mxu0 0.0
      %637 = vmatprep.subr.mxu0 0.0
      %638 = vmatpush2.xpose.msra.mxu0 0.0
      %639 = vmatprep.subr.mxu0 0.0
      %640 = vmatpush2.xpose.msra.mxu0 0.0
      %641 = vmatprep.subr.mxu0 0.0
      %642 = vmatpush2.xpose.msra.mxu0 0.0
      %643 = vmatprep.subr.mxu0 0.0
      %644 = vmatpush2.xpose.msra.mxu0 0.0
      %645 = vmatprep.subr.mxu0 0.0
      %646 = vmatpush2.xpose.msra.mxu0 0.0
      %647 = vmatprep.mubr.f32.mxu0 0.0
      %648 = vmatmul.mubr.f32.gmra.mxu0 %v579
      %v649 = vpop.f32.mrf.mxu0
      %v650 = vadd.f32 0.0, %v649
      %v651 = vpop.f32.mrf.mxu0
      %652 = vdwg.mxu0
      %653 = vrot.lane.b32.xlu0 %v570, 96
      %v654 = vpop.permute.xlu0 %653
      %v655 = vsel %vm578, %v570, 0
      %v657 = vsel %vm578, %v654, 0
      %659 = vmatprep.subr.mxu0 0.0
      %660 = vmatpush1.xpose.msra.mxu0 0.0
      %661 = vmatprep.subr.mxu0 0.0
      %662 = vmatpush1.xpose.msra.mxu0 0.0
      %663 = vmatprep.subr.mxu0 0.0
      %664 = vmatpush1.xpose.msra.mxu0 0.0
      %665 = vmatprep.subr.mxu0 0.0
      %666 = vmatpush1.xpose.msra.mxu0 0.0
      %667 = vmatprep.subr.mxu0 0.0
      %668 = vmatpush1.xpose.msra.mxu0 0.0
      %669 = vmatprep.subr.mxu0 0.0
      %670 = vmatpush1.xpose.msra.mxu0 0.0
      %671 = vmatprep.subr.mxu0 0.0
      %672 = vmatpush1.xpose.msra.mxu0 0.0
      %673 = vmatprep.subr.mxu0 0.0
      %674 = vmatpush1.xpose.msra.mxu0 0.0
      %675 = vmatprep.subr.mxu0 0.0
      %676 = vmatpush1.xpose.msra.mxu0 0.0
      %677 = vmatprep.subr.mxu0 0.0
      %678 = vmatpush1.xpose.msra.mxu0 0.0
      %679 = vmatprep.subr.mxu0 0.0
      %680 = vmatpush1.xpose.msra.mxu0 0.0
      %681 = vmatprep.subr.mxu0 0.0
      %682 = vmatpush1.xpose.msra.mxu0 0.0
      %683 = vmatprep.subr.mxu0 0.0
      %684 = vmatpush1.xpose.msra.mxu0 0.0
      %685 = vmatprep.subr.mxu0 0.0
      %686 = vmatpush1.xpose.msra.mxu0 0.0
      %687 = vmatprep.subr.mxu0 0.0
      %688 = vmatpush1.xpose.msra.mxu0 0.0
      %689 = vmatprep.subr.mxu0 0.0
      %690 = vmatpush1.xpose.msra.mxu0 %v657
      %691 = vmatprep.subr.mxu0 0.0
      %692 = vmatpush2.xpose.msra.mxu0 0.0
      %693 = vmatprep.subr.mxu0 0.0
      %694 = vmatpush2.xpose.msra.mxu0 0.0
      %695 = vmatprep.subr.mxu0 0.0
      %696 = vmatpush2.xpose.msra.mxu0 0.0
      %697 = vmatprep.subr.mxu0 0.0
      %698 = vmatpush2.xpose.msra.mxu0 0.0
      %699 = vmatprep.subr.mxu0 0.0
      %700 = vmatpush2.xpose.msra.mxu0 0.0
      %701 = vmatprep.subr.mxu0 0.0
      %702 = vmatpush2.xpose.msra.mxu0 0.0
      %703 = vmatprep.subr.mxu0 0.0
      %704 = vmatpush2.xpose.msra.mxu0 0.0
      %705 = vmatprep.subr.mxu0 0.0
      %706 = vmatpush2.xpose.msra.mxu0 0.0
      %707 = vmatprep.subr.mxu0 0.0
      %708 = vmatpush2.xpose.msra.mxu0 0.0
      %709 = vmatprep.subr.mxu0 0.0
      %710 = vmatpush2.xpose.msra.mxu0 0.0
      %711 = vmatprep.subr.mxu0 0.0
      %712 = vmatpush2.xpose.msra.mxu0 0.0
      %713 = vmatprep.subr.mxu0 0.0
      %714 = vmatpush2.xpose.msra.mxu0 0.0
      %715 = vmatprep.subr.mxu0 0.0
      %716 = vmatpush2.xpose.msra.mxu0 0.0
      %717 = vmatprep.subr.mxu0 0.0
      %718 = vmatpush2.xpose.msra.mxu0 0.0
      %719 = vmatprep.subr.mxu0 0.0
      %720 = vmatpush2.xpose.msra.mxu0 0.0
      %721 = vmatprep.subr.mxu0 0.0
      %722 = vmatpush2.xpose.msra.mxu0 0.0
      %723 = vmatprep.mubr.f32.mxu0 0.0
      %724 = vmatmul.mubr.f32.gmra.mxu0 %v655
      %v725 = vpop.f32.mrf.mxu0
      %v726 = vadd.f32 0.0, %v725
      %v727 = vpop.f32.mrf.mxu0
      %728 = vdwg.mxu0
      %729 = vrot.lane.b32.xlu0 %v572, 96
      %v730 = vpop.permute.xlu0 %729
      %v731 = vsel %vm578, %v572, 0
      %v733 = vsel %vm578, %v730, 0
      %735 = vmatprep.subr.mxu0 0.0
      %736 = vmatpush1.xpose.msra.mxu0 0.0
      %737 = vmatprep.subr.mxu0 0.0
      %738 = vmatpush1.xpose.msra.mxu0 0.0
      %739 = vmatprep.subr.mxu0 0.0
      %740 = vmatpush1.xpose.msra.mxu0 0.0
      %741 = vmatprep.subr.mxu0 0.0
      %742 = vmatpush1.xpose.msra.mxu0 0.0
      %743 = vmatprep.subr.mxu0 0.0
      %744 = vmatpush1.xpose.msra.mxu0 0.0
      %745 = vmatprep.subr.mxu0 0.0
      %746 = vmatpush1.xpose.msra.mxu0 0.0
      %747 = vmatprep.subr.mxu0 0.0
      %748 = vmatpush1.xpose.msra.mxu0 0.0
      %749 = vmatprep.subr.mxu0 0.0
      %750 = vmatpush1.xpose.msra.mxu0 0.0
      %751 = vmatprep.subr.mxu0 0.0
      %752 = vmatpush1.xpose.msra.mxu0 0.0
      %753 = vmatprep.subr.mxu0 0.0
      %754 = vmatpush1.xpose.msra.mxu0 0.0
      %755 = vmatprep.subr.mxu0 0.0
      %756 = vmatpush1.xpose.msra.mxu0 0.0
      %757 = vmatprep.subr.mxu0 0.0
      %758 = vmatpush1.xpose.msra.mxu0 0.0
      %759 = vmatprep.subr.mxu0 0.0
      %760 = vmatpush1.xpose.msra.mxu0 0.0
      %761 = vmatprep.subr.mxu0 0.0
      %762 = vmatpush1.xpose.msra.mxu0 0.0
      %763 = vmatprep.subr.mxu0 0.0
      %764 = vmatpush1.xpose.msra.mxu0 0.0
      %765 = vmatprep.subr.mxu0 0.0
      %766 = vmatpush1.xpose.msra.mxu0 %v733
      %767 = vmatprep.subr.mxu0 0.0
      %768 = vmatpush2.xpose.msra.mxu0 0.0
      %769 = vmatprep.subr.mxu0 0.0
      %770 = vmatpush2.xpose.msra.mxu0 0.0
      %771 = vmatprep.subr.mxu0 0.0
      %772 = vmatpush2.xpose.msra.mxu0 0.0
      %773 = vmatprep.subr.mxu0 0.0
      %774 = vmatpush2.xpose.msra.mxu0 0.0
      %775 = vmatprep.subr.mxu0 0.0
      %776 = vmatpush2.xpose.msra.mxu0 0.0
      %777 = vmatprep.subr.mxu0 0.0
      %778 = vmatpush2.xpose.msra.mxu0 0.0
      %779 = vmatprep.subr.mxu0 0.0
      %780 = vmatpush2.xpose.msra.mxu0 0.0
      %781 = vmatprep.subr.mxu0 0.0
      %782 = vmatpush2.xpose.msra.mxu0 0.0
      %783 = vmatprep.subr.mxu0 0.0
      %784 = vmatpush2.xpose.msra.mxu0 0.0
      %785 = vmatprep.subr.mxu0 0.0
      %786 = vmatpush2.xpose.msra.mxu0 0.0
      %787 = vmatprep.subr.mxu0 0.0
      %788 = vmatpush2.xpose.msra.mxu0 0.0
      %789 = vmatprep.subr.mxu0 0.0
      %790 = vmatpush2.xpose.msra.mxu0 0.0
      %791 = vmatprep.subr.mxu0 0.0
      %792 = vmatpush2.xpose.msra.mxu0 0.0
      %793 = vmatprep.subr.mxu0 0.0
      %794 = vmatpush2.xpose.msra.mxu0 0.0
      %795 = vmatprep.subr.mxu0 0.0
      %796 = vmatpush2.xpose.msra.mxu0 0.0
      %797 = vmatprep.subr.mxu0 0.0
      %798 = vmatpush2.xpose.msra.mxu0 0.0
      %799 = vmatprep.mubr.f32.mxu0 0.0
      %800 = vmatmul.mubr.f32.gmra.mxu0 %v731
      %v801 = vpop.f32.mrf.mxu0
      %v802 = vadd.f32 0.0, %v801
      %v803 = vpop.f32.mrf.mxu0
      %804 = vdwg.mxu0
      %805 = vrot.lane.b32.xlu0 %v574, 96
      %v806 = vpop.permute.xlu0 %805
      %v807 = vsel %vm578, %v574, 0
      %v809 = vsel %vm578, %v806, 0
      %811 = vmatprep.subr.mxu0 0.0
      %812 = vmatpush1.xpose.msra.mxu0 0.0
      %813 = vmatprep.subr.mxu0 0.0
      %814 = vmatpush1.xpose.msra.mxu0 0.0
      %815 = vmatprep.subr.mxu0 0.0
      %816 = vmatpush1.xpose.msra.mxu0 0.0
      %817 = vmatprep.subr.mxu0 0.0
      %818 = vmatpush1.xpose.msra.mxu0 0.0
      %819 = vmatprep.subr.mxu0 0.0
      %820 = vmatpush1.xpose.msra.mxu0 0.0
      %821 = vmatprep.subr.mxu0 0.0
      %822 = vmatpush1.xpose.msra.mxu0 0.0
      %823 = vmatprep.subr.mxu0 0.0
      %824 = vmatpush1.xpose.msra.mxu0 0.0
      %825 = vmatprep.subr.mxu0 0.0
      %826 = vmatpush1.xpose.msra.mxu0 0.0
      %827 = vmatprep.subr.mxu0 0.0
      %828 = vmatpush1.xpose.msra.mxu0 0.0
      %829 = vmatprep.subr.mxu0 0.0
      %830 = vmatpush1.xpose.msra.mxu0 0.0
      %831 = vmatprep.subr.mxu0 0.0
      %832 = vmatpush1.xpose.msra.mxu0 0.0
      %833 = vmatprep.subr.mxu0 0.0
      %834 = vmatpush1.xpose.msra.mxu0 0.0
      %835 = vmatprep.subr.mxu0 0.0
      %836 = vmatpush1.xpose.msra.mxu0 0.0
      %837 = vmatprep.subr.mxu0 0.0
      %838 = vmatpush1.xpose.msra.mxu0 0.0
      %839 = vmatprep.subr.mxu0 0.0
      %840 = vmatpush1.xpose.msra.mxu0 0.0
      %841 = vmatprep.subr.mxu0 0.0
      %842 = vmatpush1.xpose.msra.mxu0 %v809
      %843 = vmatprep.subr.mxu0 0.0
      %844 = vmatpush2.xpose.msra.mxu0 0.0
      %845 = vmatprep.subr.mxu0 0.0
      %846 = vmatpush2.xpose.msra.mxu0 0.0
      %847 = vmatprep.subr.mxu0 0.0
      %848 = vmatpush2.xpose.msra.mxu0 0.0
      %849 = vmatprep.subr.mxu0 0.0
      %850 = vmatpush2.xpose.msra.mxu0 0.0
      %851 = vmatprep.subr.mxu0 0.0
      %852 = vmatpush2.xpose.msra.mxu0 0.0
      %853 = vmatprep.subr.mxu0 0.0
      %854 = vmatpush2.xpose.msra.mxu0 0.0
      %855 = vmatprep.subr.mxu0 0.0
      %856 = vmatpush2.xpose.msra.mxu0 0.0
      %857 = vmatprep.subr.mxu0 0.0
      %858 = vmatpush2.xpose.msra.mxu0 0.0
      %859 = vmatprep.subr.mxu0 0.0
      %860 = vmatpush2.xpose.msra.mxu0 0.0
      %861 = vmatprep.subr.mxu0 0.0
      %862 = vmatpush2.xpose.msra.mxu0 0.0
      %863 = vmatprep.subr.mxu0 0.0
      %864 = vmatpush2.xpose.msra.mxu0 0.0
      %865 = vmatprep.subr.mxu0 0.0
      %866 = vmatpush2.xpose.msra.mxu0 0.0
      %867 = vmatprep.subr.mxu0 0.0
      %868 = vmatpush2.xpose.msra.mxu0 0.0
      %869 = vmatprep.subr.mxu0 0.0
      %870 = vmatpush2.xpose.msra.mxu0 0.0
      %871 = vmatprep.subr.mxu0 0.0
      %872 = vmatpush2.xpose.msra.mxu0 0.0
      %873 = vmatprep.subr.mxu0 0.0
      %874 = vmatpush2.xpose.msra.mxu0 0.0
      %875 = vmatprep.mubr.f32.mxu0 0.0
      %876 = vmatmul.mubr.f32.gmra.mxu0 %v807
      %v877 = vpop.f32.mrf.mxu0
      %v878 = vadd.f32 0.0, %v877
      %v879 = vpop.f32.mrf.mxu0
      %880 = vdwg.mxu0
      %v881 = vmul.f32 %v650, 0.35355338
      %v882 = vmul.f32 %v726, 0.35355338
      %v883 = vmul.f32 %v802, 0.35355338
      %v884 = vmul.f32 %v878, 0.35355338
      %v886 = vlaneseq
      %v887 = vshrl.u32 %v886, 7
      %v888 = vsub.s32 0, %v887
      %v889 = vrot.slane %v575, %v888
      %v891 = vadd.f32 %v881, %v889
      %v892 = vadd.f32 %v882, %v889
      %v893 = vadd.f32 %v883, %v889
      %v894 = vadd.f32 %v884, %v889
      %v895 = vsel %vm578, %v891, -inf
      %896 = vmax.xlane.f32.xlu0 %v895
      %v897 = vpop.xlane.xlu0 %896
      %v898 = vsel %vm578, %v892, -inf
      %899 = vmax.xlane.f32.xlu0 %v898
      %v900 = vpop.xlane.xlu0 %899
      %v901 = vsel %vm578, %v893, -inf
      %902 = vmax.xlane.f32.xlu0 %v901
      %v903 = vpop.xlane.xlu0 %902
      %v904 = vsel %vm578, %v894, -inf
      %905 = vmax.xlane.f32.xlu0 %v904
      %v906 = vpop.xlane.xlu0 %905
      %v907 = vsub.f32 %v891, %v897
      %v908 = vsub.f32 %v892, %v900
      %v909 = vsub.f32 %v893, %v903
      %v910 = vsub.f32 %v894, %v906
      %v911 = vmul.f32 %v907, 1.442695
      %v912 = vpow.pop %v911
      %v913 = vmul.f32 %v908, 1.442695
      %v914 = vpow.pop %v913
      %v915 = vmul.f32 %v909, 1.442695
      %v916 = vpow.pop %v915
      %v917 = vmul.f32 %v910, 1.442695
      %v918 = vpow.pop %v917
      %v919 = vsel %vm578, %v912, 0.0
      %920 = vadd.xlane.f32.xlu0 %v919
      %v921 = vpop.xlane.xlu0 %920
      %v922 = vsel %vm578, %v914, 0.0
      %923 = vadd.xlane.f32.xlu0 %v922
      %v924 = vpop.xlane.xlu0 %923
      %v925 = vsel %vm578, %v916, 0.0
      %926 = vadd.xlane.f32.xlu0 %v925
      %v927 = vpop.xlane.xlu0 %926
      %v928 = vsel %vm578, %v918, 0.0
      %929 = vadd.xlane.f32.xlu0 %v928
      %v930 = vpop.xlane.xlu0 %929
      %v931 = vrcp.pop %v921
      %v932 = vrcp.pop %v924
      %v933 = vrcp.pop %v927
      %v934 = vrcp.pop %v930
      %v935 = vmul.f32 %v912, %v931
      %v936 = vmul.f32 %v914, %v932
      %v937 = vmul.f32 %v916, %v933
      %v938 = vmul.f32 %v918, %v934
      %939 = vrot.lane.b32.xlu0 %v565, 64
      %v940 = vpop.permute.xlu0 %939
      %v943 = vsel %vm578, %v935, 0
      %945 = vmatprep.subr.mxu0 0.0
      %946 = vmatpush1.msra.mxu0 0.0
      %947 = vmatprep.subr.mxu0 0.0
      %948 = vmatpush1.msra.mxu0 0.0
      %949 = vmatprep.subr.mxu0 0.0
      %950 = vmatpush1.msra.mxu0 0.0
      %951 = vmatprep.subr.mxu0 0.0
      %952 = vmatpush1.msra.mxu0 0.0
      %953 = vmatprep.subr.mxu0 0.0
      %954 = vmatpush1.msra.mxu0 0.0
      %955 = vmatprep.subr.mxu0 0.0
      %956 = vmatpush1.msra.mxu0 0.0
      %957 = vmatprep.subr.mxu0 0.0
      %958 = vmatpush1.msra.mxu0 0.0
      %959 = vmatprep.subr.mxu0 0.0
      %960 = vmatpush1.msra.mxu0 0.0
      %961 = vmatprep.subr.mxu0 0.0
      %962 = vmatpush1.msra.mxu0 0.0
      %963 = vmatprep.subr.mxu0 0.0
      %964 = vmatpush1.msra.mxu0 0.0
      %965 = vmatprep.subr.mxu0 0.0
      %966 = vmatpush1.msra.mxu0 0.0
      %967 = vmatprep.subr.mxu0 0.0
      %968 = vmatpush1.msra.mxu0 0.0
      %969 = vmatprep.subr.mxu0 0.0
      %970 = vmatpush1.msra.mxu0 0.0
      %971 = vmatprep.subr.mxu0 0.0
      %972 = vmatpush1.msra.mxu0 0.0
      %973 = vmatprep.subr.mxu0 0.0
      %974 = vmatpush1.msra.mxu0 0.0
      %975 = vmatprep.subr.mxu0 0.0
      %976 = vmatpush1.msra.mxu0 %v940
      %977 = vmatprep.subr.mxu0 0.0
      %978 = vmatpush2.msra.mxu0 0.0
      %979 = vmatprep.subr.mxu0 0.0
      %980 = vmatpush2.msra.mxu0 0.0
      %981 = vmatprep.subr.mxu0 0.0
      %982 = vmatpush2.msra.mxu0 0.0
      %983 = vmatprep.subr.mxu0 0.0
      %984 = vmatpush2.msra.mxu0 0.0
      %985 = vmatprep.subr.mxu0 0.0
      %986 = vmatpush2.msra.mxu0 0.0
      %987 = vmatprep.subr.mxu0 0.0
      %988 = vmatpush2.msra.mxu0 0.0
      %989 = vmatprep.subr.mxu0 0.0
      %990 = vmatpush2.msra.mxu0 0.0
      %991 = vmatprep.subr.mxu0 0.0
      %992 = vmatpush2.msra.mxu0 0.0
      %993 = vmatprep.subr.mxu0 0.0
      %994 = vmatpush2.msra.mxu0 0.0
      %995 = vmatprep.subr.mxu0 0.0
      %996 = vmatpush2.msra.mxu0 0.0
      %997 = vmatprep.subr.mxu0 0.0
      %998 = vmatpush2.msra.mxu0 0.0
      %999 = vmatprep.subr.mxu0 0.0
      %1000 = vmatpush2.msra.mxu0 0.0
      %1001 = vmatprep.subr.mxu0 0.0
      %1002 = vmatpush2.msra.mxu0 0.0
      %1003 = vmatprep.subr.mxu0 0.0
      %1004 = vmatpush2.msra.mxu0 0.0
      %1005 = vmatprep.subr.mxu0 0.0
      %1006 = vmatpush2.msra.mxu0 0.0
      %1007 = vmatprep.subr.mxu0 0.0
      %1008 = vmatpush2.msra.mxu0 0.0
      %1009 = vmatprep.mubr.f32.mxu0 0.0
      %1010 = vmatmul.mubr.f32.gmra.mxu0 %v943
      %v1011 = vpop.f32.mrf.mxu0
      %v1012 = vadd.f32 0.0, %v1011
      %v1013 = vpop.f32.mrf.mxu0
      %1014 = vdwg.mxu0
      %1015 = vrot.lane.b32.xlu0 %v570, 64
      %v1016 = vpop.permute.xlu0 %1015
      %v1019 = vsel %vm578, %v936, 0
      %1021 = vmatprep.subr.mxu0 0.0
      %1022 = vmatpush1.msra.mxu0 0.0
      %1023 = vmatprep.subr.mxu0 0.0
      %1024 = vmatpush1.msra.mxu0 0.0
      %1025 = vmatprep.subr.mxu0 0.0
      %1026 = vmatpush1.msra.mxu0 0.0
      %1027 = vmatprep.subr.mxu0 0.0
      %1028 = vmatpush1.msra.mxu0 0.0
      %1029 = vmatprep.subr.mxu0 0.0
      %1030 = vmatpush1.msra.mxu0 0.0
      %1031 = vmatprep.subr.mxu0 0.0
      %1032 = vmatpush1.msra.mxu0 0.0
      %1033 = vmatprep.subr.mxu0 0.0
      %1034 = vmatpush1.msra.mxu0 0.0
      %1035 = vmatprep.subr.mxu0 0.0
      %1036 = vmatpush1.msra.mxu0 0.0
      %1037 = vmatprep.subr.mxu0 0.0
      %1038 = vmatpush1.msra.mxu0 0.0
      %1039 = vmatprep.subr.mxu0 0.0
      %1040 = vmatpush1.msra.mxu0 0.0
      %1041 = vmatprep.subr.mxu0 0.0
      %1042 = vmatpush1.msra.mxu0 0.0
      %1043 = vmatprep.subr.mxu0 0.0
      %1044 = vmatpush1.msra.mxu0 0.0
      %1045 = vmatprep.subr.mxu0 0.0
      %1046 = vmatpush1.msra.mxu0 0.0
      %1047 = vmatprep.subr.mxu0 0.0
      %1048 = vmatpush1.msra.mxu0 0.0
      %1049 = vmatprep.subr.mxu0 0.0
      %1050 = vmatpush1.msra.mxu0 0.0
      %1051 = vmatprep.subr.mxu0 0.0
      %1052 = vmatpush1.msra.mxu0 %v1016
      %1053 = vmatprep.subr.mxu0 0.0
      %1054 = vmatpush2.msra.mxu0 0.0
      %1055 = vmatprep.subr.mxu0 0.0
      %1056 = vmatpush2.msra.mxu0 0.0
      %1057 = vmatprep.subr.mxu0 0.0
      %1058 = vmatpush2.msra.mxu0 0.0
      %1059 = vmatprep.subr.mxu0 0.0
      %1060 = vmatpush2.msra.mxu0 0.0
      %1061 = vmatprep.subr.mxu0 0.0
      %1062 = vmatpush2.msra.mxu0 0.0
      %1063 = vmatprep.subr.mxu0 0.0
      %1064 = vmatpush2.msra.mxu0 0.0
      %1065 = vmatprep.subr.mxu0 0.0
      %1066 = vmatpush2.msra.mxu0 0.0
      %1067 = vmatprep.subr.mxu0 0.0
      %1068 = vmatpush2.msra.mxu0 0.0
      %1069 = vmatprep.subr.mxu0 0.0
      %1070 = vmatpush2.msra.mxu0 0.0
      %1071 = vmatprep.subr.mxu0 0.0
      %1072 = vmatpush2.msra.mxu0 0.0
      %1073 = vmatprep.subr.mxu0 0.0
      %1074 = vmatpush2.msra.mxu0 0.0
      %1075 = vmatprep.subr.mxu0 0.0
      %1076 = vmatpush2.msra.mxu0 0.0
      %1077 = vmatprep.subr.mxu0 0.0
      %1078 = vmatpush2.msra.mxu0 0.0
      %1079 = vmatprep.subr.mxu0 0.0
      %1080 = vmatpush2.msra.mxu0 0.0
      %1081 = vmatprep.subr.mxu0 0.0
      %1082 = vmatpush2.msra.mxu0 0.0
      %1083 = vmatprep.subr.mxu0 0.0
      %1084 = vmatpush2.msra.mxu0 0.0
      %1085 = vmatprep.mubr.f32.mxu0 0.0
      %1086 = vmatmul.mubr.f32.gmra.mxu0 %v1019
      %v1087 = vpop.f32.mrf.mxu0
      %v1088 = vadd.f32 0.0, %v1087
      %v1089 = vpop.f32.mrf.mxu0
      %1090 = vdwg.mxu0
      %1091 = vrot.lane.b32.xlu0 %v572, 64
      %v1092 = vpop.permute.xlu0 %1091
      %v1095 = vsel %vm578, %v937, 0
      %1097 = vmatprep.subr.mxu0 0.0
      %1098 = vmatpush1.msra.mxu0 0.0
      %1099 = vmatprep.subr.mxu0 0.0
      %1100 = vmatpush1.msra.mxu0 0.0
      %1101 = vmatprep.subr.mxu0 0.0
      %1102 = vmatpush1.msra.mxu0 0.0
      %1103 = vmatprep.subr.mxu0 0.0
      %1104 = vmatpush1.msra.mxu0 0.0
      %1105 = vmatprep.subr.mxu0 0.0
      %1106 = vmatpush1.msra.mxu0 0.0
      %1107 = vmatprep.subr.mxu0 0.0
      %1108 = vmatpush1.msra.mxu0 0.0
      %1109 = vmatprep.subr.mxu0 0.0
      %1110 = vmatpush1.msra.mxu0 0.0
      %1111 = vmatprep.subr.mxu0 0.0
      %1112 = vmatpush1.msra.mxu0 0.0
      %1113 = vmatprep.subr.mxu0 0.0
      %1114 = vmatpush1.msra.mxu0 0.0
      %1115 = vmatprep.subr.mxu0 0.0
      %1116 = vmatpush1.msra.mxu0 0.0
      %1117 = vmatprep.subr.mxu0 0.0
      %1118 = vmatpush1.msra.mxu0 0.0
      %1119 = vmatprep.subr.mxu0 0.0
      %1120 = vmatpush1.msra.mxu0 0.0
      %1121 = vmatprep.subr.mxu0 0.0
      %1122 = vmatpush1.msra.mxu0 0.0
      %1123 = vmatprep.subr.mxu0 0.0
      %1124 = vmatpush1.msra.mxu0 0.0
      %1125 = vmatprep.subr.mxu0 0.0
      %1126 = vmatpush1.msra.mxu0 0.0
      %1127 = vmatprep.subr.mxu0 0.0
      %1128 = vmatpush1.msra.mxu0 %v1092
      %1129 = vmatprep.subr.mxu0 0.0
      %1130 = vmatpush2.msra.mxu0 0.0
      %1131 = vmatprep.subr.mxu0 0.0
      %1132 = vmatpush2.msra.mxu0 0.0
      %1133 = vmatprep.subr.mxu0 0.0
      %1134 = vmatpush2.msra.mxu0 0.0
      %1135 = vmatprep.subr.mxu0 0.0
      %1136 = vmatpush2.msra.mxu0 0.0
      %1137 = vmatprep.subr.mxu0 0.0
      %1138 = vmatpush2.msra.mxu0 0.0
      %1139 = vmatprep.subr.mxu0 0.0
      %1140 = vmatpush2.msra.mxu0 0.0
      %1141 = vmatprep.subr.mxu0 0.0
      %1142 = vmatpush2.msra.mxu0 0.0
      %1143 = vmatprep.subr.mxu0 0.0
      %1144 = vmatpush2.msra.mxu0 0.0
      %1145 = vmatprep.subr.mxu0 0.0
      %1146 = vmatpush2.msra.mxu0 0.0
      %1147 = vmatprep.subr.mxu0 0.0
      %1148 = vmatpush2.msra.mxu0 0.0
      %1149 = vmatprep.subr.mxu0 0.0
      %1150 = vmatpush2.msra.mxu0 0.0
      %1151 = vmatprep.subr.mxu0 0.0
      %1152 = vmatpush2.msra.mxu0 0.0
      %1153 = vmatprep.subr.mxu0 0.0
      %1154 = vmatpush2.msra.mxu0 0.0
      %1155 = vmatprep.subr.mxu0 0.0
      %1156 = vmatpush2.msra.mxu0 0.0
      %1157 = vmatprep.subr.mxu0 0.0
      %1158 = vmatpush2.msra.mxu0 0.0
      %1159 = vmatprep.subr.mxu0 0.0
      %1160 = vmatpush2.msra.mxu0 0.0
      %1161 = vmatprep.mubr.f32.mxu0 0.0
      %1162 = vmatmul.mubr.f32.gmra.mxu0 %v1095
      %v1163 = vpop.f32.mrf.mxu0
      %v1164 = vadd.f32 0.0, %v1163
      %v1165 = vpop.f32.mrf.mxu0
      %1166 = vdwg.mxu0
      %1167 = vrot.lane.b32.xlu0 %v574, 64
      %v1168 = vpop.permute.xlu0 %1167
      %v1171 = vsel %vm578, %v938, 0
      %1173 = vmatprep.subr.mxu0 0.0
      %1174 = vmatpush1.msra.mxu0 0.0
      %1175 = vmatprep.subr.mxu0 0.0
      %1176 = vmatpush1.msra.mxu0 0.0
      %1177 = vmatprep.subr.mxu0 0.0
      %1178 = vmatpush1.msra.mxu0 0.0
      %1179 = vmatprep.subr.mxu0 0.0
      %1180 = vmatpush1.msra.mxu0 0.0
      %1181 = vmatprep.subr.mxu0 0.0
      %1182 = vmatpush1.msra.mxu0 0.0
      %1183 = vmatprep.subr.mxu0 0.0
      %1184 = vmatpush1.msra.mxu0 0.0
      %1185 = vmatprep.subr.mxu0 0.0
      %1186 = vmatpush1.msra.mxu0 0.0
      %1187 = vmatprep.subr.mxu0 0.0
      %1188 = vmatpush1.msra.mxu0 0.0
      %1189 = vmatprep.subr.mxu0 0.0
      %1190 = vmatpush1.msra.mxu0 0.0
      %1191 = vmatprep.subr.mxu0 0.0
      %1192 = vmatpush1.msra.mxu0 0.0
      %1193 = vmatprep.subr.mxu0 0.0
      %1194 = vmatpush1.msra.mxu0 0.0
      %1195 = vmatprep.subr.mxu0 0.0
      %1196 = vmatpush1.msra.mxu0 0.0
      %1197 = vmatprep.subr.mxu0 0.0
      %1198 = vmatpush1.msra.mxu0 0.0
      %1199 = vmatprep.subr.mxu0 0.0
      %1200 = vmatpush1.msra.mxu0 0.0
      %1201 = vmatprep.subr.mxu0 0.0
      %1202 = vmatpush1.msra.mxu0 0.0
      %1203 = vmatprep.subr.mxu0 0.0
      %1204 = vmatpush1.msra.mxu0 %v1168
      %1205 = vmatprep.subr.mxu0 0.0
      %1206 = vmatpush2.msra.mxu0 0.0
      %1207 = vmatprep.subr.mxu0 0.0
      %1208 = vmatpush2.msra.mxu0 0.0
      %1209 = vmatprep.subr.mxu0 0.0
      %1210 = vmatpush2.msra.mxu0 0.0
      %1211 = vmatprep.subr.mxu0 0.0
      %1212 = vmatpush2.msra.mxu0 0.0
      %1213 = vmatprep.subr.mxu0 0.0
      %1214 = vmatpush2.msra.mxu0 0.0
      %1215 = vmatprep.subr.mxu0 0.0
      %1216 = vmatpush2.msra.mxu0 0.0
      %1217 = vmatprep.subr.mxu0 0.0
      %1218 = vmatpush2.msra.mxu0 0.0
      %1219 = vmatprep.subr.mxu0 0.0
      %1220 = vmatpush2.msra.mxu0 0.0
      %1221 = vmatprep.subr.mxu0 0.0
      %1222 = vmatpush2.msra.mxu0 0.0
      %1223 = vmatprep.subr.mxu0 0.0
      %1224 = vmatpush2.msra.mxu0 0.0
      %1225 = vmatprep.subr.mxu0 0.0
      %1226 = vmatpush2.msra.mxu0 0.0
      %1227 = vmatprep.subr.mxu0 0.0
      %1228 = vmatpush2.msra.mxu0 0.0
      %1229 = vmatprep.subr.mxu0 0.0
      %1230 = vmatpush2.msra.mxu0 0.0
      %1231 = vmatprep.subr.mxu0 0.0
      %1232 = vmatpush2.msra.mxu0 0.0
      %1233 = vmatprep.subr.mxu0 0.0
      %1234 = vmatpush2.msra.mxu0 0.0
      %1235 = vmatprep.subr.mxu0 0.0
      %1236 = vmatpush2.msra.mxu0 0.0
      %1237 = vmatprep.mubr.f32.mxu0 0.0
      %1238 = vmatmul.mubr.f32.gmra.mxu0 %v1171
      %v1239 = vpop.f32.mrf.mxu0
      %v1240 = vadd.f32 0.0, %v1239
      %v1241 = vpop.f32.mrf.mxu0
      %1242 = vdwg.mxu0
      %1244 = vrot.lane.b32.xlu0 %v1088, 8
      %v1245 = vpop.permute.xlu0 %1244
      %1248 = vrot.lane.b32.xlu0 %v1164, 16
      %v1249 = vpop.permute.xlu0 %1248
      %1252 = vrot.lane.b32.xlu0 %v1240, 24
      %v1253 = vpop.permute.xlu0 %1252
      %v1255 = vsel %vm578, %v1012, %v1245
      %vm1256 = vcmask 130048
      %v1257 = vsel %vm1256, %v1255, %v1249
      %vm1258 = vcmask 195584
      %v1259 = vsel %vm1258, %v1257, %v1253
      %v1260 = vld [vmem:[%s5] sm:$0xff]
      %v1261 = vld [vmem:[%s5 + $0x8] sm:$0xff]
      %v1262 = vld [vmem:[%s5 + $0x10] sm:$0xff]
      %v1263 = vld [vmem:[%s5 + $0x18] sm:$0xff]
      %v1264 = vld [vmem:[%s6] sm:$0x1]
      %v1266 = vlaneseq
      %v1267 = vshrl.u32 %v1266, 7
      %v1268 = vsub.s32 0, %v1267
      %v1269 = vrot.slane %v1264, %v1268
      %v1272 = vsel %vm494, %v1259, 0
      %1274 = vmatprep.subr.mxu0 0.0
      %1275 = vmatpush1.msra.mxu0 0.0
      %1276 = vmatprep.subr.mxu0 0.0
      %1277 = vmatpush1.msra.mxu0 0.0
      %1278 = vmatprep.subr.mxu0 0.0
      %1279 = vmatpush1.msra.mxu0 0.0
      %1280 = vmatprep.subr.mxu0 0.0
      %1281 = vmatpush1.msra.mxu0 0.0
      %1282 = vmatprep.subr.mxu0 0.0
      %1283 = vmatpush1.msra.mxu0 0.0
      %1284 = vmatprep.subr.mxu0 0.0
      %1285 = vmatpush1.msra.mxu0 0.0
      %1286 = vmatprep.subr.mxu0 0.0
      %1287 = vmatpush1.msra.mxu0 0.0
      %1288 = vmatprep.subr.mxu0 0.0
      %1289 = vmatpush1.msra.mxu0 0.0
      %1290 = vmatprep.subr.mxu0 0.0
      %1291 = vmatpush1.msra.mxu0 0.0
      %1292 = vmatprep.subr.mxu0 0.0
      %1293 = vmatpush1.msra.mxu0 0.0
      %1294 = vmatprep.subr.mxu0 0.0
      %1295 = vmatpush1.msra.mxu0 0.0
      %1296 = vmatprep.subr.mxu0 0.0
      %1297 = vmatpush1.msra.mxu0 0.0
      %1298 = vmatprep.subr.mxu0 0.0
      %1299 = vmatpush1.msra.mxu0 %v1263
      %1300 = vmatprep.subr.mxu0 0.0
      %1301 = vmatpush1.msra.mxu0 %v1262
      %1302 = vmatprep.subr.mxu0 0.0
      %1303 = vmatpush1.msra.mxu0 %v1261
      %1304 = vmatprep.subr.mxu0 0.0
      %1305 = vmatpush1.msra.mxu0 %v1260
      %1306 = vmatprep.subr.mxu0 0.0
      %1307 = vmatpush2.msra.mxu0 0.0
      %1308 = vmatprep.subr.mxu0 0.0
      %1309 = vmatpush2.msra.mxu0 0.0
      %1310 = vmatprep.subr.mxu0 0.0
      %1311 = vmatpush2.msra.mxu0 0.0
      %1312 = vmatprep.subr.mxu0 0.0
      %1313 = vmatpush2.msra.mxu0 0.0
      %1314 = vmatprep.subr.mxu0 0.0
      %1315 = vmatpush2.msra.mxu0 0.0
      %1316 = vmatprep.subr.mxu0 0.0
      %1317 = vmatpush2.msra.mxu0 0.0
      %1318 = vmatprep.subr.mxu0 0.0
      %1319 = vmatpush2.msra.mxu0 0.0
      %1320 = vmatprep.subr.mxu0 0.0
      %1321 = vmatpush2.msra.mxu0 0.0
      %1322 = vmatprep.subr.mxu0 0.0
      %1323 = vmatpush2.msra.mxu0 0.0
      %1324 = vmatprep.subr.mxu0 0.0
      %1325 = vmatpush2.msra.mxu0 0.0
      %1326 = vmatprep.subr.mxu0 0.0
      %1327 = vmatpush2.msra.mxu0 0.0
      %1328 = vmatprep.subr.mxu0 0.0
      %1329 = vmatpush2.msra.mxu0 0.0
      %1330 = vmatprep.subr.mxu0 0.0
      %1331 = vmatpush2.msra.mxu0 0.0
      %1332 = vmatprep.subr.mxu0 0.0
      %1333 = vmatpush2.msra.mxu0 0.0
      %1334 = vmatprep.subr.mxu0 0.0
      %1335 = vmatpush2.msra.mxu0 0.0
      %1336 = vmatprep.subr.mxu0 0.0
      %1337 = vmatpush2.msra.mxu0 0.0
      %1338 = vmatprep.mubr.f32.mxu0 0.0
      %1339 = vmatmul.mubr.f32.gmra.mxu0 %v1272
      %v1340 = vpop.f32.mrf.mxu0
      %v1341 = vadd.f32 %v1269, %v1340
      %v1342 = vpop.f32.mrf.mxu0
      %1343 = vdwg.mxu0
      %v1344 = vadd.f32 %v482, %v1341
      %v1345 = vld [vmem:[%s7] sm:$0x1]
      %v1346 = vld [vmem:[%s8] sm:$0x1]
      %v1347 = vsel %vm494, %v1344, 0.0
      %1348 = vadd.xlane.f32.xlu0 %v1347
      %v1349 = vpop.xlane.xlu0 %1348
      %v1350 = vrcp.pop 32.0
      %v1351 = vmul.f32 %v1349, %v1350
      %v1352 = vsub.f32 %v1344, %v1351
      %v1353 = vmul.f32 %v1352, %v1352
      %v1354 = vsel %vm494, %v1353, 0.0
      %1355 = vadd.xlane.f32.xlu0 %v1354
      %v1356 = vpop.xlane.xlu0 %1355
      %v1357 = vmul.f32 %v1356, %v1350
      %v1358 = vadd.f32 %v1357, 1e-12
      %v1359 = vrsqrt.pop %v1358
      %v1360 = vmul.f32 %v1352, %v1359
      %v1362 = vlaneseq
      %v1363 = vshrl.u32 %v1362, 7
      %v1364 = vsub.s32 0, %v1363
      %v1365 = vrot.slane %v1345, %v1364
      %v1367 = vmul.f32 %v1360, %v1365
      %v1369 = vlaneseq
      %v1370 = vshrl.u32 %v1369, 7
      %v1371 = vsub.s32 0, %v1370
      %v1372 = vrot.slane %v1346, %v1371
      %v1374 = vadd.f32 %v1367, %v1372
      %v1375 = vld [vmem:[%s9] sm:$0xff]
      %v1376 = vld [vmem:[%s9 + $0x8] sm:$0xff]
      %v1377 = vld [vmem:[%s9 + $0x10] sm:$0xff]
      %v1378 = vld [vmem:[%s9 + $0x18] sm:$0xff]
      %v1379 = vld [vmem:[%s10] sm:$0x1]
      %v1381 = vlaneseq
      %v1382 = vshrl.u32 %v1381, 7
      %v1383 = vsub.s32 0, %v1382
      %v1384 = vrot.slane %v1379, %v1383
      %v1387 = vsel %vm494, %v1374, 0
      %1389 = vmatprep.subr.mxu0 0.0
      %1390 = vmatpush1.msra.mxu0 0.0
      %1391 = vmatprep.subr.mxu0 0.0
      %1392 = vmatpush1.msra.mxu0 0.0
      %1393 = vmatprep.subr.mxu0 0.0
      %1394 = vmatpush1.msra.mxu0 0.0
      %1395 = vmatprep.subr.mxu0 0.0
      %1396 = vmatpush1.msra.mxu0 0.0
      %1397 = vmatprep.subr.mxu0 0.0
      %1398 = vmatpush1.msra.mxu0 0.0
      %1399 = vmatprep.subr.mxu0 0.0
      %1400 = vmatpush1.msra.mxu0 0.0
      %1401 = vmatprep.subr.mxu0 0.0
      %1402 = vmatpush1.msra.mxu0 0.0
      %1403 = vmatprep.subr.mxu0 0.0
      %1404 = vmatpush1.msra.mxu0 0.0
      %1405 = vmatprep.subr.mxu0 0.0
      %1406 = vmatpush1.msra.mxu0 0.0
      %1407 = vmatprep.subr.mxu0 0.0
      %1408 = vmatpush1.msra.mxu0 0.0
      %1409 = vmatprep.subr.mxu0 0.0
      %1410 = vmatpush1.msra.mxu0 0.0
      %1411 = vmatprep.subr.mxu0 0.0
      %1412 = vmatpush1.msra.mxu0 0.0
      %1413 = vmatprep.subr.mxu0 0.0
      %1414 = vmatpush1.msra.mxu0 %v1378
      %1415 = vmatprep.subr.mxu0 0.0
      %1416 = vmatpush1.msra.mxu0 %v1377
      %1417 = vmatprep.subr.mxu0 0.0
      %1418 = vmatpush1.msra.mxu0 %v1376
      %1419 = vmatprep.subr.mxu0 0.0
      %1420 = vmatpush1.msra.mxu0 %v1375
      %1421 = vmatprep.subr.mxu0 0.0
      %1422 = vmatpush2.msra.mxu0 0.0
      %1423 = vmatprep.subr.mxu0 0.0
      %1424 = vmatpush2.msra.mxu0 0.0
      %1425 = vmatprep.subr.mxu0 0.0
      %1426 = vmatpush2.msra.mxu0 0.0
      %1427 = vmatprep.subr.mxu0 0.0
      %1428 = vmatpush2.msra.mxu0 0.0
      %1429 = vmatprep.subr.mxu0 0.0
      %1430 = vmatpush2.msra.mxu0 0.0
      %1431 = vmatprep.subr.mxu0 0.0
      %1432 = vmatpush2.msra.mxu0 0.0
      %1433 = vmatprep.subr.mxu0 0.0
      %1434 = vmatpush2.msra.mxu0 0.0
      %1435 = vmatprep.subr.mxu0 0.0
      %1436 = vmatpush2.msra.mxu0 0.0
      %1437 = vmatprep.subr.mxu0 0.0
      %1438 = vmatpush2.msra.mxu0 0.0
      %1439 = vmatprep.subr.mxu0 0.0
      %1440 = vmatpush2.msra.mxu0 0.0
      %1441 = vmatprep.subr.mxu0 0.0
      %1442 = vmatpush2.msra.mxu0 0.0
      %1443 = vmatprep.subr.mxu0 0.0
      %1444 = vmatpush2.msra.mxu0 0.0
      %1445 = vmatprep.subr.mxu0 0.0
      %1446 = vmatpush2.msra.mxu0 0.0
      %1447 = vmatprep.subr.mxu0 0.0
      %1448 = vmatpush2.msra.mxu0 0.0
      %1449 = vmatprep.subr.mxu0 0.0
      %1450 = vmatpush2.msra.mxu0 0.0
      %1451 = vmatprep.subr.mxu0 0.0
      %1452 = vmatpush2.msra.mxu0 0.0
      %1453 = vmatprep.mubr.f32.mxu0 0.0
      %1454 = vmatmul.mubr.f32.gmra.mxu0 %v1387
      %v1455 = vpop.f32.mrf.mxu0
      %v1456 = vadd.f32 %v1384, %v1455
      %v1457 = vpop.f32.mrf.mxu0
      %1458 = vdwg.mxu0
      %v1459 = vmul.f32 %v1456, 0.5
      %v1460 = vmul.f32 %v1456, 0.044715
      %v1461 = vmul.f32 %v1460, %v1456
      %v1462 = vmul.f32 %v1461, %v1456
      %v1463 = vadd.f32 %v1456, %v1462
      %v1464 = vmul.f32 %v1463, 0.7978846
      %v1465 = vtanh.pop %v1464
      %v1466 = vadd.f32 %v1465, 1.0
      %v1467 = vmul.f32 %v1459, %v1466
      %v1468 = vld [vmem:[%s11] sm:$0xff]
      %v1469 = vld [vmem:[%s11 + $0x8] sm:$0xff]
      %v1470 = vld [vmem:[%s11 + $0x10] sm:$0xff]
      %v1471 = vld [vmem:[%s11 + $0x18] sm:$0xff]
      %v1472 = vld [vmem:[%s11 + $0x20] sm:$0xff]
      %v1473 = vld [vmem:[%s11 + $0x28] sm:$0xff]
      %v1474 = vld [vmem:[%s11 + $0x30] sm:$0xff]
      %v1475 = vld [vmem:[%s11 + $0x38] sm:$0xff]
      %v1476 = vld [vmem:[%s12] sm:$0x1]
      %v1478 = vlaneseq
      %v1479 = vshrl.u32 %v1478, 7
      %v1480 = vsub.s32 0, %v1479
      %v1481 = vrot.slane %v1476, %v1480
      %vm1483 = vcmask 523264
      %v1485 = vsel %vm1483, %v1467, 0
      %1487 = vmatprep.subr.mxu0 0.0
      %1488 = vmatpush1.msra.mxu0 0.0
      %1489 = vmatprep.subr.mxu0 0.0
      %1490 = vmatpush1.msra.mxu0 0.0
      %1491 = vmatprep.subr.mxu0 0.0
      %1492 = vmatpush1.msra.mxu0 0.0
      %1493 = vmatprep.subr.mxu0 0.0
      %1494 = vmatpush1.msra.mxu0 0.0
      %1495 = vmatprep.subr.mxu0 0.0
      %1496 = vmatpush1.msra.mxu0 0.0
      %1497 = vmatprep.subr.mxu0 0.0
      %1498 = vmatpush1.msra.mxu0 0.0
      %1499 = vmatprep.subr.mxu0 0.0
      %1500 = vmatpush1.msra.mxu0 0.0
      %1501 = vmatprep.subr.mxu0 0.0
      %1502 = vmatpush1.msra.mxu0 0.0
      %1503 = vmatprep.subr.mxu0 0.0
      %1504 = vmatpush1.msra.mxu0 %v1475
      %1505 = vmatprep.subr.mxu0 0.0
      %1506 = vmatpush1.msra.mxu0 %v1474
      %1507 = vmatprep.subr.mxu0 0.0
      %1508 = vmatpush1.msra.mxu0 %v1473
      %1509 = vmatprep.subr.mxu0 0.0
      %1510 = vmatpush1.msra.mxu0 %v1472
      %1511 = vmatprep.subr.mxu0 0.0
      %1512 = vmatpush1.msra.mxu0 %v1471
      %1513 = vmatprep.subr.mxu0 0.0
      %1514 = vmatpush1.msra.mxu0 %v1470
      %1515 = vmatprep.subr.mxu0 0.0
      %1516 = vmatpush1.msra.mxu0 %v1469
      %1517 = vmatprep.subr.mxu0 0.0
      %1518 = vmatpush1.msra.mxu0 %v1468
      %1519 = vmatprep.subr.mxu0 0.0
      %1520 = vmatpush2.msra.mxu0 0.0
      %1521 = vmatprep.subr.mxu0 0.0
      %1522 = vmatpush2.msra.mxu0 0.0
      %1523 = vmatprep.subr.mxu0 0.0
      %1524 = vmatpush2.msra.mxu0 0.0
      %1525 = vmatprep.subr.mxu0 0.0
      %1526 = vmatpush2.msra.mxu0 0.0
      %1527 = vmatprep.subr.mxu0 0.0
      %1528 = vmatpush2.msra.mxu0 0.0
      %1529 = vmatprep.subr.mxu0 0.0
      %1530 = vmatpush2.msra.mxu0 0.0
      %1531 = vmatprep.subr.mxu0 0.0
      %1532 = vmatpush2.msra.mxu0 0.0
      %1533 = vmatprep.subr.mxu0 0.0
      %1534 = vmatpush2.msra.mxu0 0.0
      %1535 = vmatprep.subr.mxu0 0.0
      %1536 = vmatpush2.msra.mxu0 0.0
      %1537 = vmatprep.subr.mxu0 0.0
      %1538 = vmatpush2.msra.mxu0 0.0
      %1539 = vmatprep.subr.mxu0 0.0
      %1540 = vmatpush2.msra.mxu0 0.0
      %1541 = vmatprep.subr.mxu0 0.0
      %1542 = vmatpush2.msra.mxu0 0.0
      %1543 = vmatprep.subr.mxu0 0.0
      %1544 = vmatpush2.msra.mxu0 0.0
      %1545 = vmatprep.subr.mxu0 0.0
      %1546 = vmatpush2.msra.mxu0 0.0
      %1547 = vmatprep.subr.mxu0 0.0
      %1548 = vmatpush2.msra.mxu0 0.0
      %1549 = vmatprep.subr.mxu0 0.0
      %1550 = vmatpush2.msra.mxu0 0.0
      %1551 = vmatprep.mubr.f32.mxu0 0.0
      %1552 = vmatmul.mubr.f32.gmra.mxu0 %v1485
      %v1553 = vpop.f32.mrf.mxu0
      %v1554 = vadd.f32 %v1481, %v1553
      %v1555 = vpop.f32.mrf.mxu0
      %1556 = vdwg.mxu0
      %v1557 = vadd.f32 %v1374, %v1554
      %v1558 = vld [vmem:[%s13] sm:$0x1]
      %v1559 = vld [vmem:[%s14] sm:$0x1]
      %v1560 = vsel %vm494, %v1557, 0.0
      %1561 = vadd.xlane.f32.xlu0 %v1560
      %v1562 = vpop.xlane.xlu0 %1561
      %v1563 = vmul.f32 %v1562, %v1350
      %v1564 = vsub.f32 %v1557, %v1563
      %v1565 = vmul.f32 %v1564, %v1564
      %v1566 = vsel %vm494, %v1565, 0.0
      %1567 = vadd.xlane.f32.xlu0 %v1566
      %v1568 = vpop.xlane.xlu0 %1567
      %v1569 = vmul.f32 %v1568, %v1350
      %v1570 = vadd.f32 %v1569, 1e-12
      %v1571 = vrsqrt.pop %v1570
      %v1572 = vmul.f32 %v1564, %v1571
      %v1574 = vlaneseq
      %v1575 = vshrl.u32 %v1574, 7
      %v1576 = vsub.s32 0, %v1575
      %v1577 = vrot.slane %v1558, %v1576
      %v1579 = vmul.f32 %v1572, %v1577
      %v1581 = vlaneseq
      %v1582 = vshrl.u32 %v1581, 7
      %v1583 = vsub.s32 0, %v1582
      %v1584 = vrot.slane %v1559, %v1583
      %v1586 = vadd.f32 %v1579, %v1584
      %1587 = vst.msk [vmem:[#allocation2] sm:$0xff] %vm494, %v1586
      %s1588 = smul.u32 %s32, 128
      %s1589 = sld [smem:[#allocation4 + %s1588]]
      %s1590 = sadd.s32 %s1588, 1
      %s1591 = sld [smem:[#allocation4 + %s1590]]
      %s1592 = sadd.s32 %s1588, 2
      %s1593 = sld [smem:[#allocation4 + %s1592]]
      %s1594 = scalar_lea.vmem [#allocation2], %s1589
      %v1595 = vld [vmem:[%s1594] sm:$0x1]
      %s1596 = scalar_lea.vmem [#allocation2], %s1591
      %v1597 = vld [vmem:[%s1596] sm:$0x1]
      %v1598 = vadd.f32 %v1595, %v1597
      %v1599 = vmul.f32 %v1598, 0.5
      %s1600 = scalar_lea.vmem [#allocation2], %s1593
      %v1601 = vld [vmem:[%s1600] sm:$0x1]
      %v1602 = vmul.f32 %v1599, %v1601
      %vm1603 = vcmask 253952
      %1604 = vst.msk [vmem:[%s481] sm:$0x1] %vm1603, %v1602
      %p1605 = scmp.lt.s32.totalorder %s32, 1
      %s1606 = scalar_select %p1605, %s32, 1
      %s1607 = scalar_lea.vmem %s15, %s1606
      // Predicated region
      $region77: #{cross_bert_w_embeds_forward.1} parent=75 // pred_check
        %p1608 = pneg %p354
      $region78: #{cross_bert_w_embeds_forward.1} parent=75 // pred_check_branch
        %1610 = sbr.rel (%p1608) target = $region80
      $region79: #{cross_bert_w_embeds_forward.1} parent=75 // pred_region
        _
      $region80: #{cross_bert_w_embeds_forward.1} parent=75 // pred_fallthru
        _
    $region76: #{cross_bert_w_embeds_forward.1} parent=5 // pred_fallthru
      _
    %p1611 = scmp.le.s32.totalorder 2, %s27
    // Predicated region
    $region81: #{cross_bert_w_embeds_forward.1} parent=5 // pred_check
      %p1612 = pneg %p1611
    $region82: #{cross_bert_w_embeds_forward.1} parent=5 // pred_check_branch
      %1614 = sbr.rel (%p1612) target = $region84
    $region83: #{cross_bert_w_embeds_forward.1} parent=5 // pred_region
      %s1615 = ssub.s32 %s27, 2
      // Predicated region
      $region85: #{cross_bert_w_embeds_forward.1} parent=83 // pred_check
        %p1616 = pneg %p360
      $region86: #{cross_bert_w_embeds_forward.1} parent=83 // pred_check_branch
        %1618 = sbr.rel (%p1616) target = $region88
      $region87: #{cross_bert_w_embeds_forward.1} parent=83 // pred_region
        %p1619 = scmp.lt.s32.totalorder %s33, 1
        %s1620 = scalar_select %p1619, %s33, 1
        %s1621 = scalar_lea.vmem %s15, %s1620
      $region88: #{cross_bert_w_embeds_forward.1} parent=83 // pred_fallthru
        _
    $region84: #{cross_bert_w_embeds_forward.1} parent=5 // pred_fallthru
      _
  $region6: #{cross_bert_w_embeds_forward.1} parent=0 // loop_footer
    %s31 = sadd.s32 1, %s27
  $region7: #{cross_bert_w_embeds_forward.1} parent=0 // loop_footer_branch
    %26 = sbr.rel target = $region3
  $region8: #{cross_bert_w_embeds_forward.1} parent=0 // loop_exit
    _

</llo_original>
